<compile_context>
chip_gen: v7x
topology: tpu7x:2x2x1
jax: 0.10.0
libtpu: 0.0.40
codegen_flags: <defaults>
</compile_context>

<pallas_src>
import functools

import jax
import jax.numpy as jnp
import numpy as np
from jax.experimental import pallas as pl
from jax.experimental.pallas import tpu as pltpu

EPS = 1e-8  # torch.nn.functional.cosine_similarity default eps


def _cdiv(a, b):
    return -(-a // b)


def _round_up(a, b):
    return _cdiv(a, b) * b


def cos_kernel(x_ref, coef_ref, const_ref, o_ref, *, H, D, C):
    # x_ref:     (tn, 2H*D)        input rows, native dtype (f32 or bf16)
    # coef_ref:  (K*D, NCOL)       per-term coefficients, repeated across D
    # const_ref: (1, NCOL)         D_orig * b^2 in each of the three groups
    # o_ref:     (tn, C)           cosine similarity output (f32)
    tn = x_ref.shape[0]
    ncol = coef_ref.shape[1]

    # Cast each lane-aligned D-wide stripe as it is consumed (no full f32 copy).
    xs = [x_ref[:, s * D:(s + 1) * D].astype(jnp.float32) for s in range(2 * H)]
    x1, x2 = xs[:H], xs[H:]

    # Term order MUST match _coeff_table on the host.
    def pieces():
        for s in range(2 * H):            # linear terms (bias contributions)
            yield xs[s]
        for a in range(H):                # cross products  -> dot(p1, p2)
            for b in range(H):
                yield x1[a] * x2[b]
        for a in range(H):                # x1 self products -> ||p1||^2
            for b in range(a, H):
                yield x1[a] * x1[b]
        for a in range(H):                # x2 self products -> ||p2||^2
            for b in range(a, H):
                yield x2[a] * x2[b]

    # Fold the D-reductions AND the channel-coefficient combine into MXU
    # matmuls: acc[:, :] = sum_k piece_k @ coef[k*D:(k+1)*D, :].
    acc = jnp.zeros((tn, ncol), jnp.float32)
    k = -1
    for k, piece in enumerate(pieces()):
        acc = acc + jnp.dot(piece, coef_ref[k * D:(k + 1) * D, :],
                            preferred_element_type=jnp.float32)
    assert (k + 1) * D == coef_ref.shape[0]
    acc = acc + const_ref[...]

    dot_ = acc[:, 0:C]
    n1sq = acc[:, C:2 * C]
    n2sq = acc[:, 2 * C:3 * C]

    # cos = dot / (max(||p1||,eps) * max(||p2||,eps)) with one EUP rsqrt.
    denom_sq = jnp.maximum(n1sq, EPS * EPS) * jnp.maximum(n2sq, EPS * EPS)
    o_ref[...] = (dot_ * jax.lax.rsqrt(denom_sq)).astype(o_ref.dtype)


def _coeff_table(weight, bias, *, H, C, D_orig, D_pad, ncol):
    """Coefficient matrix (K*D_pad, ncol) and constant row (1, ncol).

    Column groups: [0:C]=dot, [C:2C]=||p1||^2, [2C:3C]=||p2||^2, rest zero.
    Row order matches `pieces()` in the kernel.
    """
    w = weight.reshape(C, H).astype(jnp.float32)   # w[c, a]
    b = bias.reshape(C).astype(jnp.float32)
    z = jnp.zeros((C,), jnp.float32)

    def row(cd, c1, c2):
        r = jnp.concatenate([cd, c1, c2])
        return jnp.pad(r, (0, ncol - 3 * C))

    rows = []
    for a in range(H):                             # linear x1 stripes
        rows.append(row(b * w[:, a], 2.0 * b * w[:, a], z))
    for a in range(H):                             # linear x2 stripes
        rows.append(row(b * w[:, a], z, 2.0 * b * w[:, a]))
    for a in range(H):                             # cross products
        for bb in range(H):
            rows.append(row(w[:, a] * w[:, bb], z, z))
    for a in range(H):                             # x1 self products (a<=b)
        for bb in range(a, H):
            s = 1.0 if a == bb else 2.0
            rows.append(row(z, s * w[:, a] * w[:, bb], z))
    for a in range(H):                             # x2 self products (a<=b)
        for bb in range(a, H):
            s = 1.0 if a == bb else 2.0
            rows.append(row(z, z, s * w[:, a] * w[:, bb]))

    coeff = jnp.stack(rows)                        # (K, ncol)
    coef = jnp.repeat(coeff, D_pad, axis=0)        # (K*D_pad, ncol)
    const = jnp.pad(jnp.concatenate([D_orig * b * b] * 3),
                    (0, ncol - 3 * C)).reshape(1, ncol)
    return coef, const


def _choose_tile(n_rows, per_row_bytes, fixed_bytes,
                 budget_bytes=20 * 1024 * 1024, max_tile=4096):
    """Pick (tile_rows, grid_steps): large VMEM-budgeted tiles, always an even
    number of >=2 grid steps so the parallel axis splits across v7x's 2 TCs."""
    avail = max(budget_bytes - fixed_bytes, 1 << 20)
    cap = min(max_tile, max(8, avail // max(per_row_bytes, 1)))
    steps = max(2, _cdiv(n_rows, cap))
    if steps % 2:
        steps += 1
    tn = max(8, _round_up(_cdiv(n_rows, steps), 8))
    return tn, steps


def cos_forward(x, weight, bias, *, shot_num, tn=None):
    """x: [B, S, shot_num, D], weight: [C, 1, H, 1], bias: [C] -> [B*S, C]."""
    B, S, sn, D = x.shape
    assert sn == shot_num and shot_num % 2 == 0
    H = shot_num // 2
    C = weight.shape[0]
    N = B * S

    # Lane-align D (zero padding is exact for this formulation, see header).
    D_pad = _round_up(D, 128)
    x3 = x.reshape(N, shot_num, D)
    if D_pad != D:
        x3 = jnp.pad(x3, ((0, 0), (0, 0), (0, D_pad - D)))
    x_flat = x3.reshape(N, shot_num * D_pad)       # native dtype, lane-dense

    K_total = 2 * H + 2 * H * H + H
    NCOL = _round_up(3 * C, 128)
    coef, const = _coeff_table(weight, bias, H=H, C=C,
                               D_orig=D, D_pad=D_pad, ncol=NCOL)

    in_item = jnp.dtype(x.dtype).itemsize
    per_row = (2 * shot_num * D_pad * in_item          # double-buffered input
               + (shot_num + 1) * D_pad * 4            # f32 stripes + product
               + 2 * NCOL * 4)                         # accumulator/epilogue
    fixed = 2 * K_total * D_pad * NCOL * 4             # resident coefficients
    if tn is None:
        tn, steps = _choose_tile(N, per_row, fixed)
    else:
        tn = _round_up(max(tn, 8), 8)
        steps = _cdiv(N, tn)

    N_pad = tn * steps
    if N_pad != N:
        x_flat = jnp.pad(x_flat, ((0, N_pad - N), (0, 0)))

    kernel = functools.partial(cos_kernel, H=H, D=D_pad, C=C)

    out = pl.pallas_call(
        kernel,
        out_shape=jax.ShapeDtypeStruct((N_pad, C), jnp.float32),
        grid_spec=pltpu.PrefetchScalarGridSpec(
            num_scalar_prefetch=0,
            grid=(steps,),
            in_specs=[
                pl.BlockSpec((tn, shot_num * D_pad), lambda i: (i, 0)),
                pl.BlockSpec((K_total * D_pad, NCOL), lambda i: (0, 0)),
                pl.BlockSpec((1, NCOL), lambda i: (0, 0)),
            ],
            out_specs=pl.BlockSpec((tn, C), lambda i: (i, 0)),
        ),
        compiler_params=pltpu.CompilerParams(
            dimension_semantics=("parallel",),
            vmem_limit_bytes=32 * 1024 * 1024),
    )(x_flat, coef, const)

    return out[:N] if N_pad != N else out


def cos_reference(x, weight, bias, *, shot_num):
    """Plain-JAX reference matching the PyTorch forward (exact f32 math)."""
    B, S, sn, D = x.shape
    H = shot_num // 2
    C = weight.shape[0]
    xf = x.reshape(B * S, sn, D).astype(jnp.float32)
    x1, x2 = xf[:, :H, :], xf[:, H:, :]
    w = weight.reshape(C, H).astype(jnp.float32)
    b = bias.astype(jnp.float32)
    p1 = jnp.sum(w[None, :, :, None] * x1[:, None, :, :], axis=2) + b[None, :, None]
    p2 = jnp.sum(w[None, :, :, None] * x2[:, None, :, :], axis=2) + b[None, :, None]
    dot = jnp.sum(p1 * p2, axis=-1)
    n1 = jnp.sqrt(jnp.sum(p1 * p1, axis=-1))
    n2 = jnp.sqrt(jnp.sum(p2 * p2, axis=-1))
    return dot / (jnp.maximum(n1, EPS) * jnp.maximum(n2, EPS))


if __name__ == "__main__":
    # Small shapes consistent with the module: [B, S, shot_num, D] -> [B*S, C]
    B, S, shot_num, D = 2, 8, 4, 128
    C = 16  # cfg.model.sim_channel
    H = shot_num // 2

    key = jax.random.PRNGKey(0)
    kx, kw, kb = jax.random.split(key, 3)
    x = jax.random.normal(kx, (B, S, shot_num, D), dtype=jnp.float32)
    # Conv2d(1, C, kernel_size=(H, 1)): weight [C, 1, H, 1], bias [C]
    fan_in = 1 * H * 1
    bound = 1.0 / np.sqrt(fan_in)
    weight = jax.random.uniform(kw, (C, 1, H, 1), jnp.float32, -bound, bound)
    bias = jax.random.uniform(kb, (C,), jnp.float32, -bound, bound)

    out = cos_forward(x, weight, bias, shot_num=shot_num)
    out = jax.block_until_ready(out)

    ref = cos_reference(x, weight, bias, shot_num=shot_num)
    np.testing.assert_allclose(np.asarray(out), np.asarray(ref),
                               rtol=1e-4, atol=1e-4)
    assert out.shape == (B * S, C)
    print("KERNEL_OK")
</pallas_src>

<mosaic_0001>
module attributes {stable_mosaic.version = 11 : i64} {
  func.func @cos_kernel(%arg0: i32, %arg1: memref<8x512xf32, #tpu.memory_space<vmem>>, %arg2: memref<1792x128xf32, #tpu.memory_space<vmem>>, %arg3: memref<1x128xf32, #tpu.memory_space<vmem>>, %arg4: memref<8x16xf32, #tpu.memory_space<vmem>>) attributes {dimension_semantics = [#tpu.dimension_semantics<parallel>], iteration_bounds = array<i64: 2>, scalar_prefetch = 0 : i64, scratch_operands = 0 : i64, tpu.core_type = #tpu.core_type<tc>, window_params = [{transform_indices = @transform_0, window_bounds = array<i64: 8, 512>}, {pipeline_mode = #tpu.pipeline_mode<synchronous>, transform_indices = @transform_1, window_bounds = array<i64: 1792, 128>}, {pipeline_mode = #tpu.pipeline_mode<synchronous>, transform_indices = @transform_2, window_bounds = array<i64: 1, 128>}, {transform_indices = @transform_3, window_bounds = array<i64: 8, 16>}]} {
    %c0 = arith.constant 0 : index
    %c0_0 = arith.constant 0 : index
    %0 = vector.load %arg1[%c0, %c0_0] : memref<8x512xf32, #tpu.memory_space<vmem>>, vector<8x128xf32>
    %c0_1 = arith.constant 0 : index
    %c128 = arith.constant 128 : index
    %1 = vector.load %arg1[%c0_1, %c128] : memref<8x512xf32, #tpu.memory_space<vmem>>, vector<8x128xf32>
    %c0_2 = arith.constant 0 : index
    %c256 = arith.constant 256 : index
    %2 = vector.load %arg1[%c0_2, %c256] : memref<8x512xf32, #tpu.memory_space<vmem>>, vector<8x128xf32>
    %c0_3 = arith.constant 0 : index
    %c384 = arith.constant 384 : index
    %3 = vector.load %arg1[%c0_3, %c384] : memref<8x512xf32, #tpu.memory_space<vmem>>, vector<8x128xf32>
    %cst = arith.constant 0.000000e+00 : f32
    %4 = vector.broadcast %cst : f32 to vector<8x128xf32>
    %c0_4 = arith.constant 0 : index
    %c0_5 = arith.constant 0 : index
    %5 = vector.load %arg2[%c0_4, %c0_5] : memref<1792x128xf32, #tpu.memory_space<vmem>>, vector<128x128xf32>
    %cst_6 = arith.constant dense<0.000000e+00> : vector<8x128xf32>
    %6 = tpu.matmul %0, %5, %cst_6 {dimension_numbers = #tpu.dot_dimension_numbers<[1], [0], [0], [1], [0, 0, 1, 1], [], []>} : vector<8x128xf32>, vector<128x128xf32>, vector<8x128xf32> -> vector<8x128xf32>
    %7 = arith.addf %4, %6 : vector<8x128xf32>
    %c128_7 = arith.constant 128 : index
    %c0_8 = arith.constant 0 : index
    %8 = vector.load %arg2[%c128_7, %c0_8] : memref<1792x128xf32, #tpu.memory_space<vmem>>, vector<128x128xf32>
    %cst_9 = arith.constant dense<0.000000e+00> : vector<8x128xf32>
    %9 = tpu.matmul %1, %8, %cst_9 {dimension_numbers = #tpu.dot_dimension_numbers<[1], [0], [0], [1], [0, 0, 1, 1], [], []>} : vector<8x128xf32>, vector<128x128xf32>, vector<8x128xf32> -> vector<8x128xf32>
    %10 = arith.addf %7, %9 : vector<8x128xf32>
    %c256_10 = arith.constant 256 : index
    %c0_11 = arith.constant 0 : index
    %11 = vector.load %arg2[%c256_10, %c0_11] : memref<1792x128xf32, #tpu.memory_space<vmem>>, vector<128x128xf32>
    %cst_12 = arith.constant dense<0.000000e+00> : vector<8x128xf32>
    %12 = tpu.matmul %2, %11, %cst_12 {dimension_numbers = #tpu.dot_dimension_numbers<[1], [0], [0], [1], [0, 0, 1, 1], [], []>} : vector<8x128xf32>, vector<128x128xf32>, vector<8x128xf32> -> vector<8x128xf32>
    %13 = arith.addf %10, %12 : vector<8x128xf32>
    %c384_13 = arith.constant 384 : index
    %c0_14 = arith.constant 0 : index
    %14 = vector.load %arg2[%c384_13, %c0_14] : memref<1792x128xf32, #tpu.memory_space<vmem>>, vector<128x128xf32>
    %cst_15 = arith.constant dense<0.000000e+00> : vector<8x128xf32>
    %15 = tpu.matmul %3, %14, %cst_15 {dimension_numbers = #tpu.dot_dimension_numbers<[1], [0], [0], [1], [0, 0, 1, 1], [], []>} : vector<8x128xf32>, vector<128x128xf32>, vector<8x128xf32> -> vector<8x128xf32>
    %16 = arith.addf %13, %15 : vector<8x128xf32>
    %17 = arith.mulf %0, %2 : vector<8x128xf32>
    %c512 = arith.constant 512 : index
    %c0_16 = arith.constant 0 : index
    %18 = vector.load %arg2[%c512, %c0_16] : memref<1792x128xf32, #tpu.memory_space<vmem>>, vector<128x128xf32>
    %cst_17 = arith.constant dense<0.000000e+00> : vector<8x128xf32>
    %19 = tpu.matmul %17, %18, %cst_17 {dimension_numbers = #tpu.dot_dimension_numbers<[1], [0], [0], [1], [0, 0, 1, 1], [], []>} : vector<8x128xf32>, vector<128x128xf32>, vector<8x128xf32> -> vector<8x128xf32>
    %20 = arith.addf %16, %19 : vector<8x128xf32>
    %21 = arith.mulf %0, %3 : vector<8x128xf32>
    %c640 = arith.constant 640 : index
    %c0_18 = arith.constant 0 : index
    %22 = vector.load %arg2[%c640, %c0_18] : memref<1792x128xf32, #tpu.memory_space<vmem>>, vector<128x128xf32>
    %cst_19 = arith.constant dense<0.000000e+00> : vector<8x128xf32>
    %23 = tpu.matmul %21, %22, %cst_19 {dimension_numbers = #tpu.dot_dimension_numbers<[1], [0], [0], [1], [0, 0, 1, 1], [], []>} : vector<8x128xf32>, vector<128x128xf32>, vector<8x128xf32> -> vector<8x128xf32>
    %24 = arith.addf %20, %23 : vector<8x128xf32>
    %25 = arith.mulf %1, %2 : vector<8x128xf32>
    %c768 = arith.constant 768 : index
    %c0_20 = arith.constant 0 : index
    %26 = vector.load %arg2[%c768, %c0_20] : memref<1792x128xf32, #tpu.memory_space<vmem>>, vector<128x128xf32>
    %cst_21 = arith.constant dense<0.000000e+00> : vector<8x128xf32>
    %27 = tpu.matmul %25, %26, %cst_21 {dimension_numbers = #tpu.dot_dimension_numbers<[1], [0], [0], [1], [0, 0, 1, 1], [], []>} : vector<8x128xf32>, vector<128x128xf32>, vector<8x128xf32> -> vector<8x128xf32>
    %28 = arith.addf %24, %27 : vector<8x128xf32>
    %29 = arith.mulf %1, %3 : vector<8x128xf32>
    %c896 = arith.constant 896 : index
    %c0_22 = arith.constant 0 : index
    %30 = vector.load %arg2[%c896, %c0_22] : memref<1792x128xf32, #tpu.memory_space<vmem>>, vector<128x128xf32>
    %cst_23 = arith.constant dense<0.000000e+00> : vector<8x128xf32>
    %31 = tpu.matmul %29, %30, %cst_23 {dimension_numbers = #tpu.dot_dimension_numbers<[1], [0], [0], [1], [0, 0, 1, 1], [], []>} : vector<8x128xf32>, vector<128x128xf32>, vector<8x128xf32> -> vector<8x128xf32>
    %32 = arith.addf %28, %31 : vector<8x128xf32>
    %33 = arith.mulf %0, %0 : vector<8x128xf32>
    %c1024 = arith.constant 1024 : index
    %c0_24 = arith.constant 0 : index
    %34 = vector.load %arg2[%c1024, %c0_24] : memref<1792x128xf32, #tpu.memory_space<vmem>>, vector<128x128xf32>
    %cst_25 = arith.constant dense<0.000000e+00> : vector<8x128xf32>
    %35 = tpu.matmul %33, %34, %cst_25 {dimension_numbers = #tpu.dot_dimension_numbers<[1], [0], [0], [1], [0, 0, 1, 1], [], []>} : vector<8x128xf32>, vector<128x128xf32>, vector<8x128xf32> -> vector<8x128xf32>
    %36 = arith.addf %32, %35 : vector<8x128xf32>
    %37 = arith.mulf %0, %1 : vector<8x128xf32>
    %c1152 = arith.constant 1152 : index
    %c0_26 = arith.constant 0 : index
    %38 = vector.load %arg2[%c1152, %c0_26] : memref<1792x128xf32, #tpu.memory_space<vmem>>, vector<128x128xf32>
    %cst_27 = arith.constant dense<0.000000e+00> : vector<8x128xf32>
    %39 = tpu.matmul %37, %38, %cst_27 {dimension_numbers = #tpu.dot_dimension_numbers<[1], [0], [0], [1], [0, 0, 1, 1], [], []>} : vector<8x128xf32>, vector<128x128xf32>, vector<8x128xf32> -> vector<8x128xf32>
    %40 = arith.addf %36, %39 : vector<8x128xf32>
    %41 = arith.mulf %1, %1 : vector<8x128xf32>
    %c1280 = arith.constant 1280 : index
    %c0_28 = arith.constant 0 : index
    %42 = vector.load %arg2[%c1280, %c0_28] : memref<1792x128xf32, #tpu.memory_space<vmem>>, vector<128x128xf32>
    %cst_29 = arith.constant dense<0.000000e+00> : vector<8x128xf32>
    %43 = tpu.matmul %41, %42, %cst_29 {dimension_numbers = #tpu.dot_dimension_numbers<[1], [0], [0], [1], [0, 0, 1, 1], [], []>} : vector<8x128xf32>, vector<128x128xf32>, vector<8x128xf32> -> vector<8x128xf32>
    %44 = arith.addf %40, %43 : vector<8x128xf32>
    %45 = arith.mulf %2, %2 : vector<8x128xf32>
    %c1408 = arith.constant 1408 : index
    %c0_30 = arith.constant 0 : index
    %46 = vector.load %arg2[%c1408, %c0_30] : memref<1792x128xf32, #tpu.memory_space<vmem>>, vector<128x128xf32>
    %cst_31 = arith.constant dense<0.000000e+00> : vector<8x128xf32>
    %47 = tpu.matmul %45, %46, %cst_31 {dimension_numbers = #tpu.dot_dimension_numbers<[1], [0], [0], [1], [0, 0, 1, 1], [], []>} : vector<8x128xf32>, vector<128x128xf32>, vector<8x128xf32> -> vector<8x128xf32>
    %48 = arith.addf %44, %47 : vector<8x128xf32>
    %49 = arith.mulf %2, %3 : vector<8x128xf32>
    %c1536 = arith.constant 1536 : index
    %c0_32 = arith.constant 0 : index
    %50 = vector.load %arg2[%c1536, %c0_32] : memref<1792x128xf32, #tpu.memory_space<vmem>>, vector<128x128xf32>
    %cst_33 = arith.constant dense<0.000000e+00> : vector<8x128xf32>
    %51 = tpu.matmul %49, %50, %cst_33 {dimension_numbers = #tpu.dot_dimension_numbers<[1], [0], [0], [1], [0, 0, 1, 1], [], []>} : vector<8x128xf32>, vector<128x128xf32>, vector<8x128xf32> -> vector<8x128xf32>
    %52 = arith.addf %48, %51 : vector<8x128xf32>
    %53 = arith.mulf %3, %3 : vector<8x128xf32>
    %c1664 = arith.constant 1664 : index
    %c0_34 = arith.constant 0 : index
    %54 = vector.load %arg2[%c1664, %c0_34] : memref<1792x128xf32, #tpu.memory_space<vmem>>, vector<128x128xf32>
    %cst_35 = arith.constant dense<0.000000e+00> : vector<8x128xf32>
    %55 = tpu.matmul %53, %54, %cst_35 {dimension_numbers = #tpu.dot_dimension_numbers<[1], [0], [0], [1], [0, 0, 1, 1], [], []>} : vector<8x128xf32>, vector<128x128xf32>, vector<8x128xf32> -> vector<8x128xf32>
    %56 = arith.addf %52, %55 : vector<8x128xf32>
    %c0_36 = arith.constant 0 : index
    %c0_37 = arith.constant 0 : index
    %57 = vector.load %arg3[%c0_36, %c0_37] : memref<1x128xf32, #tpu.memory_space<vmem>>, vector<1x128xf32>
    %58 = vector.broadcast %57 : vector<1x128xf32> to vector<8x128xf32>
    %59 = arith.addf %56, %58 : vector<8x128xf32>
    %60 = vector.extract_strided_slice %59 {offsets = [0, 0], sizes = [8, 16], strides = [1, 1]} : vector<8x128xf32> to vector<8x16xf32>
    %61 = vector.extract_strided_slice %59 {offsets = [0, 16], sizes = [8, 16], strides = [1, 1]} : vector<8x128xf32> to vector<8x16xf32>
    %62 = vector.extract_strided_slice %59 {offsets = [0, 32], sizes = [8, 16], strides = [1, 1]} : vector<8x128xf32> to vector<8x16xf32>
    %cst_38 = arith.constant 1.000000e-16 : f32
    %63 = vector.broadcast %cst_38 : f32 to vector<8x16xf32>
    %64 = arith.maximumf %61, %63 : vector<8x16xf32>
    %cst_39 = arith.constant 1.000000e-16 : f32
    %65 = vector.broadcast %cst_39 : f32 to vector<8x16xf32>
    %66 = arith.maximumf %62, %65 : vector<8x16xf32>
    %67 = arith.mulf %64, %66 : vector<8x16xf32>
    %68 = math.rsqrt %67 : vector<8x16xf32>
    %69 = arith.mulf %60, %68 : vector<8x16xf32>
    %c0_40 = arith.constant 0 : index
    %c0_41 = arith.constant 0 : index
    %70 = vector.load %arg4[%c0_40, %c0_41] : memref<8x16xf32, #tpu.memory_space<vmem>>, vector<8x16xf32>
    tpu.vector_store %arg4[%c0_40, %c0_41], %69 {strides = array<i32>} : memref<8x16xf32, #tpu.memory_space<vmem>>, vector<8x16xf32>,
    return
  }
  func.func @transform_0(%arg0: i32) -> (i32, i32) {
    %c0_i32 = arith.constant 0 : i32
    %c0_i32_0 = arith.constant 0 : i32
    return %arg0, %c0_i32 : i32, i32
  }
  func.func @transform_1(%arg0: i32) -> (i32, i32) {
    %c0_i32 = arith.constant 0 : i32
    %c0_i32_0 = arith.constant 0 : i32
    %c0_i32_1 = arith.constant 0 : i32
    return %c0_i32, %c0_i32_0 : i32, i32
  }
  func.func @transform_2(%arg0: i32) -> (i32, i32) {
    %c0_i32 = arith.constant 0 : i32
    %c0_i32_0 = arith.constant 0 : i32
    %c0_i32_1 = arith.constant 0 : i32
    return %c0_i32, %c0_i32_0 : i32, i32
  }
  func.func @transform_3(%arg0: i32) -> (i32, i32) {
    %c0_i32 = arith.constant 0 : i32
    %c0_i32_0 = arith.constant 0 : i32
    return %arg0, %c0_i32 : i32, i32
  }
}

</mosaic_0001>

<llo_original>
// kernel: tpu_custom_call.1
$region0: #{tpu_custom_call.1}
  #allocation0 [shape = 'u32[]', space=smem, size = 0x4, offset = 0x4, fixed_abs, tag = 'smem constant byte address 0x4 - core index']
  #allocation1 [shape = 'u32[144,128]{1,0:T(1,128)}', space=vmem, size = 0x12000, scoped, tag = 'internal scratch']
  %s0 = inlined_call_operand.hbm [shape: f32[16,512], index: 0, kind: input, shape index: {}]
  %s1 = inlined_call_operand.hbm [shape: f32[1792,128], index: 1, kind: input, shape index: {}]
  %s2 = inlined_call_operand.vmem [shape: f32[1,128], index: 2, kind: input, shape index: {}]
  %s3 = inlined_call_operand.hbm [shape: f32[16,16], index: 3, kind: output, shape index: {}]
  %s4 = sld [smem:[#allocation0]]
  $region53: #{tpu_custom_call.1} parent=0
    _
  %s6 = ssub.s32 1, %s4
  %s7 = scalar_select 0, %s6, %s4
  $region1: #{tpu_custom_call.1} parent=0
    #allocation2 [shape = 'u8[32768]{0}', space=vmem, size = 0x8000, scoped, tag = 'input window, operand 0']
    #allocation3 [shape = 's32[2]{0}', space=sflag, size = 0x8, scoped, tag = 'scoped memory for tpu_custom_call.1']
    #allocation4 [shape = 's32[2]{0}', space=sflag, size = 0x8, scoped, tag = 'scoped memory for tpu_custom_call.1']
    #allocation5 [shape = 'u8[917504]{0}', space=vmem, size = 0xe0000, scoped, tag = 'input window, operand 1, single buffered']
    #allocation6 [shape = 's32[1]{0}', space=sflag, size = 0x4, scoped, tag = 'scoped memory for tpu_custom_call.1']
    #allocation7 [shape = 'u8[8192]{0}', space=vmem, size = 0x2000, scoped, tag = 'output window, operand 0']
    %8 = vsyncpa [#allocation3], 0
    %s9 = scalar_lea.sflag [#allocation3], 1
    %10 = vsyncpa %s9, 0
    %11 = vsyncpa [#allocation6], 0
    %12 = vsyncpa [#allocation4], 0
    %s13 = scalar_lea.sflag [#allocation4], 1
    %14 = vsyncpa %s13, 0
    loop: start=0, step=1, limit=4
    $region2: #{tpu_custom_call.1} parent=1 // loop_pre_header
      _
    $region3: #{tpu_custom_call.1} parent=1 // loop_header
      %s16 = sphi 0, %s20
      %p17 = scmp.ge.s32.totalorder %s16, 4
      %s26 = sphi 0, %s28
      %s29 = sphi 0, %s26
      %s30 = sphi 0, %s29
      %s46 = sphi 0, %s30
      %s50 = sphi 0, %s50
      %s52 = sphi 0, %s50
      %s53 = sphi 0, %s52
      %s67 = sphi 0, %s53
      %s71 = sphi 0, %s71
      %s73 = sphi 0, %s71
      %s74 = sphi 0, %s73
      %s88 = sphi 0, %s74
      %s94 = sphi 0, %s96
      %s97 = sphi 0, %s94
      %s98 = sphi 0, %s97
      %s114 = sphi 0, %s98
    $region4: #{tpu_custom_call.1} parent=1 // loop_header_branch
      %19 = sbr.rel (%p17) target = $region8
    $region5: #{tpu_custom_call.1} parent=1 // loop_body
      %s21 = ssub.s32 %s16, 1
      %s22 = ssub.s32 %s16, 2
      %s23 = sadd.s32 %s16, 1
      %s24 = ssub.s32 %s16, %s23
      %p25 = scmp.eq.s32.totalorder %s24, 0
      %s27 = sadd.s32 %s26, 1
      %s28 = scalar_select %p25, %s26, %s27
      %p31 = pneg %p25
      %p32 = scmp.eq.s32.totalorder %s16, 1
      %p33 = por %p31, %p32
      %p34 = scmp.ne.s32.totalorder %s26, %s29
      %p35 = scmp.eq.s32.totalorder %s16, 0
      %p36 = por %p34, %p35
      %p37 = scmp.ne.s32.totalorder %s26, %s29
      %p38 = scmp.eq.s32.totalorder %s21, 1
      %p39 = por %p37, %p38
      %p40 = scmp.ne.s32.totalorder %s29, %s30
      %p41 = scmp.eq.s32.totalorder %s21, 0
      %p42 = por %p40, %p41
      %p43 = scmp.ne.s32.totalorder %s29, %s30
      %p44 = scmp.eq.s32.totalorder %s22, 1
      %p45 = por %p43, %p44
      %p47 = scmp.ne.s32.totalorder %s30, %s46
      %p48 = scmp.eq.s32.totalorder %s22, 0
      %p49 = por %p47, %p48
      %s51 = sadd.s32 %s50, 1
      %p54 = scmp.eq.s32.totalorder %s16, 1
      %p55 = scmp.ne.s32.totalorder %s50, %s52
      %p56 = scmp.eq.s32.totalorder %s16, 0
      %p57 = por %p55, %p56
      %p58 = scmp.ne.s32.totalorder %s50, %s52
      %p59 = scmp.eq.s32.totalorder %s21, 1
      %p60 = por %p58, %p59
      %p61 = scmp.ne.s32.totalorder %s52, %s53
      %p62 = scmp.eq.s32.totalorder %s21, 0
      %p63 = por %p61, %p62
      %p64 = scmp.ne.s32.totalorder %s52, %s53
      %p65 = scmp.eq.s32.totalorder %s22, 1
      %p66 = por %p64, %p65
      %p68 = scmp.ne.s32.totalorder %s53, %s67
      %p69 = scmp.eq.s32.totalorder %s22, 0
      %p70 = por %p68, %p69
      %s72 = sadd.s32 %s71, 1
      %p75 = scmp.eq.s32.totalorder %s16, 1
      %p76 = scmp.ne.s32.totalorder %s71, %s73
      %p77 = scmp.eq.s32.totalorder %s16, 0
      %p78 = por %p76, %p77
      %p79 = scmp.ne.s32.totalorder %s71, %s73
      %p80 = scmp.eq.s32.totalorder %s21, 1
      %p81 = por %p79, %p80
      %p82 = scmp.ne.s32.totalorder %s73, %s74
      %p83 = scmp.eq.s32.totalorder %s21, 0
      %p84 = por %p82, %p83
      %p85 = scmp.ne.s32.totalorder %s73, %s74
      %p86 = scmp.eq.s32.totalorder %s22, 1
      %p87 = por %p85, %p86
      %p89 = scmp.ne.s32.totalorder %s74, %s88
      %p90 = scmp.eq.s32.totalorder %s22, 0
      %p91 = por %p89, %p90
      %s92 = ssub.s32 %s16, %s23
      %p93 = scmp.eq.s32.totalorder %s92, 0
      %s95 = sadd.s32 %s94, 1
      %s96 = scalar_select %p93, %s94, %s95
      %p99 = pneg %p93
      %p100 = scmp.eq.s32.totalorder %s16, 1
      %p101 = por %p99, %p100
      %p102 = scmp.ne.s32.totalorder %s94, %s97
      %p103 = scmp.eq.s32.totalorder %s16, 0
      %p104 = por %p102, %p103
      %p105 = scmp.ne.s32.totalorder %s94, %s97
      %p106 = scmp.eq.s32.totalorder %s21, 1
      %p107 = por %p105, %p106
      %p108 = scmp.ne.s32.totalorder %s97, %s98
      %p109 = scmp.eq.s32.totalorder %s21, 0
      %p110 = por %p108, %p109
      %p111 = scmp.ne.s32.totalorder %s97, %s98
      %p112 = scmp.eq.s32.totalorder %s22, 1
      %p113 = por %p111, %p112
      %p115 = scmp.ne.s32.totalorder %s98, %s114
      %p116 = scmp.eq.s32.totalorder %s22, 0
      %p117 = por %p115, %p116
      %p118 = scmp.le.s32.totalorder 1, %s16
      %p119 = scmp.lt.s32.totalorder %s16, 3
      %p120 = pnand %p118, %p119
      %p121 = pneg %p120
      // Predicated region
      $region9: #{tpu_custom_call.1} parent=5 // pred_check
        _
      $region10: #{tpu_custom_call.1} parent=5 // pred_check_branch
        %123 = sbr.rel (%p120) target = $region12
      $region11: #{tpu_custom_call.1} parent=5 // pred_region
        %s124 = ssub.s32 %s16, 1
        // Predicated region
        $region13: #{tpu_custom_call.1} parent=11 // pred_check
          %p125 = pneg %p63
        $region14: #{tpu_custom_call.1} parent=11 // pred_check_branch
          %127 = sbr.rel (%p125) target = $region16
        $region15: #{tpu_custom_call.1} parent=11 // pred_region
          %s129 = ssub.s32 28672, 28672
          %130 = vsyncadd [#allocation6], %s129
          %s131 = sshll.u32 [#allocation5], 4
          %s132 = int_to_ptr.vmem [resolvable:$true] %s131
          %137 = dma.hbm_to_vmem [thread:$0]  %s1, 28672, %s132, [#allocation6], 128, 128, 8
        $region16: #{tpu_custom_call.1} parent=11 // pred_fallthru
          _
        // Predicated region
        $region17: #{tpu_custom_call.1} parent=11 // pred_check
          %p138 = pneg %p84
        $region18: #{tpu_custom_call.1} parent=11 // pred_check_branch
          %140 = sbr.rel (%p138) target = $region20
        $region19: #{tpu_custom_call.1} parent=11 // pred_region
          _
        $region20: #{tpu_custom_call.1} parent=11 // pred_fallthru
          _
      $region12: #{tpu_custom_call.1} parent=5 // pred_fallthru
        _
      %p141 = scmp.lt.s32.totalorder %s16, 2
      // Predicated region
      $region21: #{tpu_custom_call.1} parent=5 // pred_check
        %p142 = pneg %p141
      $region22: #{tpu_custom_call.1} parent=5 // pred_check_branch
        %144 = sbr.rel (%p142) target = $region24
      $region23: #{tpu_custom_call.1} parent=5 // pred_region
        // Predicated region
        $region25: #{tpu_custom_call.1} parent=23 // pred_check
          %p145 = pneg %p36
        $region26: #{tpu_custom_call.1} parent=23 // pred_check_branch
          %147 = sbr.rel (%p145) target = $region28
        $region27: #{tpu_custom_call.1} parent=23 // pred_region
          %s148 = sand.u32 %s26, 1
          %s149 = scalar_lea.sflag [#allocation3], %s148
          %s150 = sand.u32 %s26, 1
          %s151 = smul.addr %s150, 32
          %s152 = scalar_lea.vmem [#allocation2], %s151
          %s154 = ssub.s32 512, 512
          %155 = vsyncadd %s149, %s154
          %s156 = smul.addr %s16, 4
          %s157 = smul.addr %s156, 128
          %s158 = scalar_lea.hbm %s0, %s157
          %s160 = sshll.u32 %s152, 4
          %s161 = int_to_ptr.vmem [resolvable:$true] %s160
          %163 = dma.hbm_to_vmem [thread:$0]  %s158, 512, %s161, %s149
        $region28: #{tpu_custom_call.1} parent=23 // pred_fallthru
          _
      $region24: #{tpu_custom_call.1} parent=5 // pred_fallthru
        _
      %p164 = scmp.le.s32.totalorder 1, %s16
      %p165 = scmp.lt.s32.totalorder %s16, 3
      %p166 = pnand %p164, %p165
      %p167 = pneg %p166
      // Predicated region
      $region29: #{tpu_custom_call.1} parent=5 // pred_check
        _
      $region30: #{tpu_custom_call.1} parent=5 // pred_check_branch
        %169 = sbr.rel (%p166) target = $region32
      $region31: #{tpu_custom_call.1} parent=5 // pred_region
        %s170 = ssub.s32 %s16, 1
        %s171 = sand.u32 %s29, 1
        %s172 = scalar_lea.sflag [#allocation3], %s171
        %s173 = sand.u32 %s29, 1
        %s174 = smul.addr %s173, 32
        %s175 = scalar_lea.vmem [#allocation2], %s174
        // Predicated region
        $region33: #{tpu_custom_call.1} parent=31 // pred_check
          %p176 = pneg %p42
        $region34: #{tpu_custom_call.1} parent=31 // pred_check_branch
          %178 = sbr.rel (%p176) target = $region36
        $region35: #{tpu_custom_call.1} parent=31 // pred_region
          %179 = dma.done %s172, 512
        $region36: #{tpu_custom_call.1} parent=31 // pred_fallthru
          _
        // Predicated region
        $region37: #{tpu_custom_call.1} parent=31 // pred_check
          %p180 = pneg %p63
        $region38: #{tpu_custom_call.1} parent=31 // pred_check_branch
          %182 = sbr.rel (%p180) target = $region40
        $region39: #{tpu_custom_call.1} parent=31 // pred_region
          %183 = dma.done [#allocation6], 28672
        $region40: #{tpu_custom_call.1} parent=31 // pred_fallthru
          _
        %s184 = sand.u32 %s29, 1
        %s185 = scalar_lea.sflag [#allocation3], %s184
        %s186 = sand.u32 %s29, 1
        %s187 = smul.addr %s186, 32
        %s188 = scalar_lea.vmem [#allocation2], %s187
        %p189 = pneg %p42
        %p190 = pneg %p39
        %p191 = pneg %p63
        %p192 = pneg %p60
        %p193 = pneg %p84
        %p194 = pneg %p81
        %p195 = pneg %p110
        %p196 = pneg %p107
        %s197 = sand.u32 %s97, 1
        %s198 = scalar_lea.sflag [#allocation4], %s197
        %s199 = sand.u32 %s97, 1
        %s200 = smul.addr %s199, 8
        %s201 = scalar_lea.vmem [#allocation7], %s200
        %v202 = vld [vmem:[%s175] sm:$0xff]
        %v203 = vld [vmem:[%s175 + $0x8] sm:$0xff]
        %v204 = vld [vmem:[%s175 + $0x10] sm:$0xff]
        %v205 = vld [vmem:[%s175 + $0x18] sm:$0xff]
        %v206 = vld [vmem:[#allocation5] sm:$0xff]
        %v207 = vld [vmem:[#allocation5 + $0x8] sm:$0xff]
        %v208 = vld [vmem:[#allocation5 + $0x10] sm:$0xff]
        %v209 = vld [vmem:[#allocation5 + $0x18] sm:$0xff]
        %v210 = vld [vmem:[#allocation5 + $0x20] sm:$0xff]
        %v211 = vld [vmem:[#allocation5 + $0x28] sm:$0xff]
        %v212 = vld [vmem:[#allocation5 + $0x30] sm:$0xff]
        %v213 = vld [vmem:[#allocation5 + $0x38] sm:$0xff]
        %v214 = vld [vmem:[#allocation5 + $0x40] sm:$0xff]
        %v215 = vld [vmem:[#allocation5 + $0x48] sm:$0xff]
        %v216 = vld [vmem:[#allocation5 + $0x50] sm:$0xff]
        %v217 = vld [vmem:[#allocation5 + $0x58] sm:$0xff]
        %v218 = vld [vmem:[#allocation5 + $0x60] sm:$0xff]
        %v219 = vld [vmem:[#allocation5 + $0x68] sm:$0xff]
        %v220 = vld [vmem:[#allocation5 + $0x70] sm:$0xff]
        %v221 = vld [vmem:[#allocation5 + $0x78] sm:$0xff]
        %v222 = vld [vmem:[#allocation5 + $0x80] sm:$0xff]
        %v223 = vld [vmem:[#allocation5 + $0x88] sm:$0xff]
        %v224 = vld [vmem:[#allocation5 + $0x90] sm:$0xff]
        %v225 = vld [vmem:[#allocation5 + $0x98] sm:$0xff]
        %v226 = vld [vmem:[#allocation5 + $0xa0] sm:$0xff]
        %v227 = vld [vmem:[#allocation5 + $0xa8] sm:$0xff]
        %v228 = vld [vmem:[#allocation5 + $0xb0] sm:$0xff]
        %v229 = vld [vmem:[#allocation5 + $0xb8] sm:$0xff]
        %v230 = vld [vmem:[#allocation5 + $0xc0] sm:$0xff]
        %v231 = vld [vmem:[#allocation5 + $0xc8] sm:$0xff]
        %v232 = vld [vmem:[#allocation5 + $0xd0] sm:$0xff]
        %v233 = vld [vmem:[#allocation5 + $0xd8] sm:$0xff]
        %v234 = vld [vmem:[#allocation5 + $0xe0] sm:$0xff]
        %v235 = vld [vmem:[#allocation5 + $0xe8] sm:$0xff]
        %v236 = vld [vmem:[#allocation5 + $0xf0] sm:$0xff]
        %v237 = vld [vmem:[#allocation5 + $0xf8] sm:$0xff]
        %238 = vmatprep.subr.mxu0 0.0
        %239 = vmatpush1.msra.mxu0 %v222
        %240 = vmatprep.subr.mxu0 0.0
        %241 = vmatpush1.msra.mxu0 %v223
        %242 = vmatprep.subr.mxu0 0.0
        %243 = vmatpush1.msra.mxu0 %v224
        %244 = vmatprep.subr.mxu0 0.0
        %245 = vmatpush1.msra.mxu0 %v225
        %246 = vmatprep.subr.mxu0 0.0
        %247 = vmatpush1.msra.mxu0 %v226
        %248 = vmatprep.subr.mxu0 0.0
        %249 = vmatpush1.msra.mxu0 %v227
        %250 = vmatprep.subr.mxu0 0.0
        %251 = vmatpush1.msra.mxu0 %v228
        %252 = vmatprep.subr.mxu0 0.0
        %253 = vmatpush1.msra.mxu0 %v229
        %254 = vmatprep.subr.mxu0 0.0
        %255 = vmatpush1.msra.mxu0 %v230
        %256 = vmatprep.subr.mxu0 0.0
        %257 = vmatpush1.msra.mxu0 %v231
        %258 = vmatprep.subr.mxu0 0.0
        %259 = vmatpush1.msra.mxu0 %v232
        %260 = vmatprep.subr.mxu0 0.0
        %261 = vmatpush1.msra.mxu0 %v233
        %262 = vmatprep.subr.mxu0 0.0
        %263 = vmatpush1.msra.mxu0 %v234
        %264 = vmatprep.subr.mxu0 0.0
        %265 = vmatpush1.msra.mxu0 %v235
        %266 = vmatprep.subr.mxu0 0.0
        %267 = vmatpush1.msra.mxu0 %v236
        %268 = vmatprep.subr.mxu0 0.0
        %269 = vmatpush1.msra.mxu0 %v237
        %270 = vmatprep.subr.mxu0 0.0
        %271 = vmatpush1.msra.mxu0 0.0
        %272 = vmatprep.subr.mxu0 0.0
        %273 = vmatpush1.msra.mxu0 0.0
        %274 = vmatprep.subr.mxu0 0.0
        %275 = vmatpush1.msra.mxu0 0.0
        %276 = vmatprep.subr.mxu0 0.0
        %277 = vmatpush1.msra.mxu0 0.0
        %278 = vmatprep.subr.mxu0 0.0
        %279 = vmatpush1.msra.mxu0 0.0
        %280 = vmatprep.subr.mxu0 0.0
        %281 = vmatpush1.msra.mxu0 0.0
        %282 = vmatprep.subr.mxu0 0.0
        %283 = vmatpush1.msra.mxu0 0.0
        %284 = vmatprep.subr.mxu0 0.0
        %285 = vmatpush1.msra.mxu0 0.0
        %286 = vmatprep.subr.mxu0 0.0
        %287 = vmatpush1.msra.mxu0 0.0
        %288 = vmatprep.subr.mxu0 0.0
        %289 = vmatpush1.msra.mxu0 0.0
        %290 = vmatprep.subr.mxu0 0.0
        %291 = vmatpush1.msra.mxu0 0.0
        %292 = vmatprep.subr.mxu0 0.0
        %293 = vmatpush1.msra.mxu0 0.0
        %294 = vmatprep.subr.mxu0 0.0
        %295 = vmatpush1.msra.mxu0 0.0
        %296 = vmatprep.subr.mxu0 0.0
        %297 = vmatpush1.msra.mxu0 0.0
        %298 = vmatprep.subr.mxu0 0.0
        %299 = vmatpush1.msra.mxu0 0.0
        %300 = vmatprep.subr.mxu0 0.0
        %301 = vmatpush1.msra.mxu0 0.0
        %302 = vmatprep.mubr.f32.mxu0 0.0
        %303 = vmatmul.mubr.f32.gmra.mrb[0].mxu0 %v203
        %v304 = vpop.f32.mrb[0].mxu0
        %v305 = vadd.f32 0.0, %v304
        %v306 = vpop.f32.mrb[0].mxu0
        %307 = vdwg.mxu0
        %308 = vmatprep.subr.mxu0 0.0
        %309 = vmatpush1.msra.mxu0 %v206
        %310 = vmatprep.subr.mxu0 0.0
        %311 = vmatpush1.msra.mxu0 %v207
        %312 = vmatprep.subr.mxu0 0.0
        %313 = vmatpush1.msra.mxu0 %v208
        %314 = vmatprep.subr.mxu0 0.0
        %315 = vmatpush1.msra.mxu0 %v209
        %316 = vmatprep.subr.mxu0 0.0
        %317 = vmatpush1.msra.mxu0 %v210
        %318 = vmatprep.subr.mxu0 0.0
        %319 = vmatpush1.msra.mxu0 %v211
        %320 = vmatprep.subr.mxu0 0.0
        %321 = vmatpush1.msra.mxu0 %v212
        %322 = vmatprep.subr.mxu0 0.0
        %323 = vmatpush1.msra.mxu0 %v213
        %324 = vmatprep.subr.mxu0 0.0
        %325 = vmatpush1.msra.mxu0 %v214
        %326 = vmatprep.subr.mxu0 0.0
        %327 = vmatpush1.msra.mxu0 %v215
        %328 = vmatprep.subr.mxu0 0.0
        %329 = vmatpush1.msra.mxu0 %v216
        %330 = vmatprep.subr.mxu0 0.0
        %331 = vmatpush1.msra.mxu0 %v217
        %332 = vmatprep.subr.mxu0 0.0
        %333 = vmatpush1.msra.mxu0 %v218
        %334 = vmatprep.subr.mxu0 0.0
        %335 = vmatpush1.msra.mxu0 %v219
        %336 = vmatprep.subr.mxu0 0.0
        %337 = vmatpush1.msra.mxu0 %v220
        %338 = vmatprep.subr.mxu0 0.0
        %339 = vmatpush1.msra.mxu0 %v221
        %340 = vmatprep.subr.mxu0 0.0
        %341 = vmatpush1.msra.mxu0 0.0
        %342 = vmatprep.subr.mxu0 0.0
        %343 = vmatpush1.msra.mxu0 0.0
        %344 = vmatprep.subr.mxu0 0.0
        %345 = vmatpush1.msra.mxu0 0.0
        %346 = vmatprep.subr.mxu0 0.0
        %347 = vmatpush1.msra.mxu0 0.0
        %348 = vmatprep.subr.mxu0 0.0
        %349 = vmatpush1.msra.mxu0 0.0
        %350 = vmatprep.subr.mxu0 0.0
        %351 = vmatpush1.msra.mxu0 0.0
        %352 = vmatprep.subr.mxu0 0.0
        %353 = vmatpush1.msra.mxu0 0.0
        %354 = vmatprep.subr.mxu0 0.0
        %355 = vmatpush1.msra.mxu0 0.0
        %356 = vmatprep.subr.mxu0 0.0
        %357 = vmatpush1.msra.mxu0 0.0
        %358 = vmatprep.subr.mxu0 0.0
        %359 = vmatpush1.msra.mxu0 0.0
        %360 = vmatprep.subr.mxu0 0.0
        %361 = vmatpush1.msra.mxu0 0.0
        %362 = vmatprep.subr.mxu0 0.0
        %363 = vmatpush1.msra.mxu0 0.0
        %364 = vmatprep.subr.mxu0 0.0
        %365 = vmatpush1.msra.mxu0 0.0
        %366 = vmatprep.subr.mxu0 0.0
        %367 = vmatpush1.msra.mxu0 0.0
        %368 = vmatprep.subr.mxu0 0.0
        %369 = vmatpush1.msra.mxu0 0.0
        %370 = vmatprep.subr.mxu0 0.0
        %371 = vmatpush1.msra.mxu0 0.0
        %372 = vmatprep.mubr.f32.mxu0 0.0
        %373 = vmatmul.mubr.f32.gmra.mrb[0].mxu0 %v202
        %v374 = vpop.f32.mrb[0].mxu0
        %v375 = vadd.f32 %v305, %v374
        %v376 = vpop.f32.mrb[0].mxu0
        %377 = vdwg.mxu0
        %v378 = vld [vmem:[#allocation5 + $0x100] sm:$0xff]
        %v379 = vld [vmem:[#allocation5 + $0x108] sm:$0xff]
        %v380 = vld [vmem:[#allocation5 + $0x110] sm:$0xff]
        %v381 = vld [vmem:[#allocation5 + $0x118] sm:$0xff]
        %v382 = vld [vmem:[#allocation5 + $0x120] sm:$0xff]
        %v383 = vld [vmem:[#allocation5 + $0x128] sm:$0xff]
        %v384 = vld [vmem:[#allocation5 + $0x130] sm:$0xff]
        %v385 = vld [vmem:[#allocation5 + $0x138] sm:$0xff]
        %v386 = vld [vmem:[#allocation5 + $0x140] sm:$0xff]
        %v387 = vld [vmem:[#allocation5 + $0x148] sm:$0xff]
        %v388 = vld [vmem:[#allocation5 + $0x150] sm:$0xff]
        %v389 = vld [vmem:[#allocation5 + $0x158] sm:$0xff]
        %v390 = vld [vmem:[#allocation5 + $0x160] sm:$0xff]
        %v391 = vld [vmem:[#allocation5 + $0x168] sm:$0xff]
        %v392 = vld [vmem:[#allocation5 + $0x170] sm:$0xff]
        %v393 = vld [vmem:[#allocation5 + $0x178] sm:$0xff]
        %394 = vmatprep.subr.mxu0 0.0
        %395 = vmatpush1.msra.mxu0 %v378
        %396 = vmatprep.subr.mxu0 0.0
        %397 = vmatpush1.msra.mxu0 %v379
        %398 = vmatprep.subr.mxu0 0.0
        %399 = vmatpush1.msra.mxu0 %v380
        %400 = vmatprep.subr.mxu0 0.0
        %401 = vmatpush1.msra.mxu0 %v381
        %402 = vmatprep.subr.mxu0 0.0
        %403 = vmatpush1.msra.mxu0 %v382
        %404 = vmatprep.subr.mxu0 0.0
        %405 = vmatpush1.msra.mxu0 %v383
        %406 = vmatprep.subr.mxu0 0.0
        %407 = vmatpush1.msra.mxu0 %v384
        %408 = vmatprep.subr.mxu0 0.0
        %409 = vmatpush1.msra.mxu0 %v385
        %410 = vmatprep.subr.mxu0 0.0
        %411 = vmatpush1.msra.mxu0 %v386
        %412 = vmatprep.subr.mxu0 0.0
        %413 = vmatpush1.msra.mxu0 %v387
        %414 = vmatprep.subr.mxu0 0.0
        %415 = vmatpush1.msra.mxu0 %v388
        %416 = vmatprep.subr.mxu0 0.0
        %417 = vmatpush1.msra.mxu0 %v389
        %418 = vmatprep.subr.mxu0 0.0
        %419 = vmatpush1.msra.mxu0 %v390
        %420 = vmatprep.subr.mxu0 0.0
        %421 = vmatpush1.msra.mxu0 %v391
        %422 = vmatprep.subr.mxu0 0.0
        %423 = vmatpush1.msra.mxu0 %v392
        %424 = vmatprep.subr.mxu0 0.0
        %425 = vmatpush1.msra.mxu0 %v393
        %426 = vmatprep.subr.mxu0 0.0
        %427 = vmatpush1.msra.mxu0 0.0
        %428 = vmatprep.subr.mxu0 0.0
        %429 = vmatpush1.msra.mxu0 0.0
        %430 = vmatprep.subr.mxu0 0.0
        %431 = vmatpush1.msra.mxu0 0.0
        %432 = vmatprep.subr.mxu0 0.0
        %433 = vmatpush1.msra.mxu0 0.0
        %434 = vmatprep.subr.mxu0 0.0
        %435 = vmatpush1.msra.mxu0 0.0
        %436 = vmatprep.subr.mxu0 0.0
        %437 = vmatpush1.msra.mxu0 0.0
        %438 = vmatprep.subr.mxu0 0.0
        %439 = vmatpush1.msra.mxu0 0.0
        %440 = vmatprep.subr.mxu0 0.0
        %441 = vmatpush1.msra.mxu0 0.0
        %442 = vmatprep.subr.mxu0 0.0
        %443 = vmatpush1.msra.mxu0 0.0
        %444 = vmatprep.subr.mxu0 0.0
        %445 = vmatpush1.msra.mxu0 0.0
        %446 = vmatprep.subr.mxu0 0.0
        %447 = vmatpush1.msra.mxu0 0.0
        %448 = vmatprep.subr.mxu0 0.0
        %449 = vmatpush1.msra.mxu0 0.0
        %450 = vmatprep.subr.mxu0 0.0
        %451 = vmatpush1.msra.mxu0 0.0
        %452 = vmatprep.subr.mxu0 0.0
        %453 = vmatpush1.msra.mxu0 0.0
        %454 = vmatprep.subr.mxu0 0.0
        %455 = vmatpush1.msra.mxu0 0.0
        %456 = vmatprep.subr.mxu0 0.0
        %457 = vmatpush1.msra.mxu0 0.0
        %458 = vmatprep.mubr.f32.mxu0 0.0
        %459 = vmatmul.mubr.f32.gmra.mrb[0].mxu0 %v204
        %v460 = vpop.f32.mrb[0].mxu0
        %v461 = vadd.f32 0.0, %v460
        %v462 = vpop.f32.mrb[0].mxu0
        %463 = vdwg.mxu0
        %v464 = vadd.f32 %v375, %v461
        %v465 = vld [vmem:[#allocation5 + $0x180] sm:$0xff]
        %v466 = vld [vmem:[#allocation5 + $0x188] sm:$0xff]
        %v467 = vld [vmem:[#allocation5 + $0x190] sm:$0xff]
        %v468 = vld [vmem:[#allocation5 + $0x198] sm:$0xff]
        %v469 = vld [vmem:[#allocation5 + $0x1a0] sm:$0xff]
        %v470 = vld [vmem:[#allocation5 + $0x1a8] sm:$0xff]
        %v471 = vld [vmem:[#allocation5 + $0x1b0] sm:$0xff]
        %v472 = vld [vmem:[#allocation5 + $0x1b8] sm:$0xff]
        %v473 = vld [vmem:[#allocation5 + $0x1c0] sm:$0xff]
        %v474 = vld [vmem:[#allocation5 + $0x1c8] sm:$0xff]
        %v475 = vld [vmem:[#allocation5 + $0x1d0] sm:$0xff]
        %v476 = vld [vmem:[#allocation5 + $0x1d8] sm:$0xff]
        %v477 = vld [vmem:[#allocation5 + $0x1e0] sm:$0xff]
        %v478 = vld [vmem:[#allocation5 + $0x1e8] sm:$0xff]
        %v479 = vld [vmem:[#allocation5 + $0x1f0] sm:$0xff]
        %v480 = vld [vmem:[#allocation5 + $0x1f8] sm:$0xff]
        %481 = vmatprep.subr.mxu0 0.0
        %482 = vmatpush1.msra.mxu0 %v465
        %483 = vmatprep.subr.mxu0 0.0
        %484 = vmatpush1.msra.mxu0 %v466
        %485 = vmatprep.subr.mxu0 0.0
        %486 = vmatpush1.msra.mxu0 %v467
        %487 = vmatprep.subr.mxu0 0.0
        %488 = vmatpush1.msra.mxu0 %v468
        %489 = vmatprep.subr.mxu0 0.0
        %490 = vmatpush1.msra.mxu0 %v469
        %491 = vmatprep.subr.mxu0 0.0
        %492 = vmatpush1.msra.mxu0 %v470
        %493 = vmatprep.subr.mxu0 0.0
        %494 = vmatpush1.msra.mxu0 %v471
        %495 = vmatprep.subr.mxu0 0.0
        %496 = vmatpush1.msra.mxu0 %v472
        %497 = vmatprep.subr.mxu0 0.0
        %498 = vmatpush1.msra.mxu0 %v473
        %499 = vmatprep.subr.mxu0 0.0
        %500 = vmatpush1.msra.mxu0 %v474
        %501 = vmatprep.subr.mxu0 0.0
        %502 = vmatpush1.msra.mxu0 %v475
        %503 = vmatprep.subr.mxu0 0.0
        %504 = vmatpush1.msra.mxu0 %v476
        %505 = vmatprep.subr.mxu0 0.0
        %506 = vmatpush1.msra.mxu0 %v477
        %507 = vmatprep.subr.mxu0 0.0
        %508 = vmatpush1.msra.mxu0 %v478
        %509 = vmatprep.subr.mxu0 0.0
        %510 = vmatpush1.msra.mxu0 %v479
        %511 = vmatprep.subr.mxu0 0.0
        %512 = vmatpush1.msra.mxu0 %v480
        %513 = vmatprep.subr.mxu0 0.0
        %514 = vmatpush1.msra.mxu0 0.0
        %515 = vmatprep.subr.mxu0 0.0
        %516 = vmatpush1.msra.mxu0 0.0
        %517 = vmatprep.subr.mxu0 0.0
        %518 = vmatpush1.msra.mxu0 0.0
        %519 = vmatprep.subr.mxu0 0.0
        %520 = vmatpush1.msra.mxu0 0.0
        %521 = vmatprep.subr.mxu0 0.0
        %522 = vmatpush1.msra.mxu0 0.0
        %523 = vmatprep.subr.mxu0 0.0
        %524 = vmatpush1.msra.mxu0 0.0
        %525 = vmatprep.subr.mxu0 0.0
        %526 = vmatpush1.msra.mxu0 0.0
        %527 = vmatprep.subr.mxu0 0.0
        %528 = vmatpush1.msra.mxu0 0.0
        %529 = vmatprep.subr.mxu0 0.0
        %530 = vmatpush1.msra.mxu0 0.0
        %531 = vmatprep.subr.mxu0 0.0
        %532 = vmatpush1.msra.mxu0 0.0
        %533 = vmatprep.subr.mxu0 0.0
        %534 = vmatpush1.msra.mxu0 0.0
        %535 = vmatprep.subr.mxu0 0.0
        %536 = vmatpush1.msra.mxu0 0.0
        %537 = vmatprep.subr.mxu0 0.0
        %538 = vmatpush1.msra.mxu0 0.0
        %539 = vmatprep.subr.mxu0 0.0
        %540 = vmatpush1.msra.mxu0 0.0
        %541 = vmatprep.subr.mxu0 0.0
        %542 = vmatpush1.msra.mxu0 0.0
        %543 = vmatprep.subr.mxu0 0.0
        %544 = vmatpush1.msra.mxu0 0.0
        %545 = vmatprep.mubr.f32.mxu0 0.0
        %546 = vmatmul.mubr.f32.gmra.mrb[0].mxu0 %v205
        %v547 = vpop.f32.mrb[0].mxu0
        %v548 = vadd.f32 0.0, %v547
        %v549 = vpop.f32.mrb[0].mxu0
        %550 = vdwg.mxu0
        %v551 = vadd.f32 %v464, %v548
        %v552 = vmul.f32 %v202, %v204
        %v553 = vld [vmem:[#allocation5 + $0x200] sm:$0xff]
        %v554 = vld [vmem:[#allocation5 + $0x208] sm:$0xff]
        %v555 = vld [vmem:[#allocation5 + $0x210] sm:$0xff]
        %v556 = vld [vmem:[#allocation5 + $0x218] sm:$0xff]
        %v557 = vld [vmem:[#allocation5 + $0x220] sm:$0xff]
        %v558 = vld [vmem:[#allocation5 + $0x228] sm:$0xff]
        %v559 = vld [vmem:[#allocation5 + $0x230] sm:$0xff]
        %v560 = vld [vmem:[#allocation5 + $0x238] sm:$0xff]
        %v561 = vld [vmem:[#allocation5 + $0x240] sm:$0xff]
        %v562 = vld [vmem:[#allocation5 + $0x248] sm:$0xff]
        %v563 = vld [vmem:[#allocation5 + $0x250] sm:$0xff]
        %v564 = vld [vmem:[#allocation5 + $0x258] sm:$0xff]
        %v565 = vld [vmem:[#allocation5 + $0x260] sm:$0xff]
        %v566 = vld [vmem:[#allocation5 + $0x268] sm:$0xff]
        %v567 = vld [vmem:[#allocation5 + $0x270] sm:$0xff]
        %v568 = vld [vmem:[#allocation5 + $0x278] sm:$0xff]
        %569 = vmatprep.subr.mxu0 0.0
        %570 = vmatpush1.msra.mxu0 %v553
        %571 = vmatprep.subr.mxu0 0.0
        %572 = vmatpush1.msra.mxu0 %v554
        %573 = vmatprep.subr.mxu0 0.0
        %574 = vmatpush1.msra.mxu0 %v555
        %575 = vmatprep.subr.mxu0 0.0
        %576 = vmatpush1.msra.mxu0 %v556
        %577 = vmatprep.subr.mxu0 0.0
        %578 = vmatpush1.msra.mxu0 %v557
        %579 = vmatprep.subr.mxu0 0.0
        %580 = vmatpush1.msra.mxu0 %v558
        %581 = vmatprep.subr.mxu0 0.0
        %582 = vmatpush1.msra.mxu0 %v559
        %583 = vmatprep.subr.mxu0 0.0
        %584 = vmatpush1.msra.mxu0 %v560
        %585 = vmatprep.subr.mxu0 0.0
        %586 = vmatpush1.msra.mxu0 %v561
        %587 = vmatprep.subr.mxu0 0.0
        %588 = vmatpush1.msra.mxu0 %v562
        %589 = vmatprep.subr.mxu0 0.0
        %590 = vmatpush1.msra.mxu0 %v563
        %591 = vmatprep.subr.mxu0 0.0
        %592 = vmatpush1.msra.mxu0 %v564
        %593 = vmatprep.subr.mxu0 0.0
        %594 = vmatpush1.msra.mxu0 %v565
        %595 = vmatprep.subr.mxu0 0.0
        %596 = vmatpush1.msra.mxu0 %v566
        %597 = vmatprep.subr.mxu0 0.0
        %598 = vmatpush1.msra.mxu0 %v567
        %599 = vmatprep.subr.mxu0 0.0
        %600 = vmatpush1.msra.mxu0 %v568
        %601 = vmatprep.subr.mxu0 0.0
        %602 = vmatpush1.msra.mxu0 0.0
        %603 = vmatprep.subr.mxu0 0.0
        %604 = vmatpush1.msra.mxu0 0.0
        %605 = vmatprep.subr.mxu0 0.0
        %606 = vmatpush1.msra.mxu0 0.0
        %607 = vmatprep.subr.mxu0 0.0
        %608 = vmatpush1.msra.mxu0 0.0
        %609 = vmatprep.subr.mxu0 0.0
        %610 = vmatpush1.msra.mxu0 0.0
        %611 = vmatprep.subr.mxu0 0.0
        %612 = vmatpush1.msra.mxu0 0.0
        %613 = vmatprep.subr.mxu0 0.0
        %614 = vmatpush1.msra.mxu0 0.0
        %615 = vmatprep.subr.mxu0 0.0
        %616 = vmatpush1.msra.mxu0 0.0
        %617 = vmatprep.subr.mxu0 0.0
        %618 = vmatpush1.msra.mxu0 0.0
        %619 = vmatprep.subr.mxu0 0.0
        %620 = vmatpush1.msra.mxu0 0.0
        %621 = vmatprep.subr.mxu0 0.0
        %622 = vmatpush1.msra.mxu0 0.0
        %623 = vmatprep.subr.mxu0 0.0
        %624 = vmatpush1.msra.mxu0 0.0
        %625 = vmatprep.subr.mxu0 0.0
        %626 = vmatpush1.msra.mxu0 0.0
        %627 = vmatprep.subr.mxu0 0.0
        %628 = vmatpush1.msra.mxu0 0.0
        %629 = vmatprep.subr.mxu0 0.0
        %630 = vmatpush1.msra.mxu0 0.0
        %631 = vmatprep.subr.mxu0 0.0
        %632 = vmatpush1.msra.mxu0 0.0
        %633 = vmatprep.mubr.f32.mxu0 0.0
        %634 = vmatmul.mubr.f32.gmra.mrb[0].mxu0 %v552
        %v635 = vpop.f32.mrb[0].mxu0
        %v636 = vadd.f32 0.0, %v635
        %v637 = vpop.f32.mrb[0].mxu0
        %638 = vdwg.mxu0
        %v639 = vadd.f32 %v551, %v636
        %v640 = vmul.f32 %v202, %v205
        %v641 = vld [vmem:[#allocation5 + $0x280] sm:$0xff]
        %v642 = vld [vmem:[#allocation5 + $0x288] sm:$0xff]
        %v643 = vld [vmem:[#allocation5 + $0x290] sm:$0xff]
        %v644 = vld [vmem:[#allocation5 + $0x298] sm:$0xff]
        %v645 = vld [vmem:[#allocation5 + $0x2a0] sm:$0xff]
        %v646 = vld [vmem:[#allocation5 + $0x2a8] sm:$0xff]
        %v647 = vld [vmem:[#allocation5 + $0x2b0] sm:$0xff]
        %v648 = vld [vmem:[#allocation5 + $0x2b8] sm:$0xff]
        %v649 = vld [vmem:[#allocation5 + $0x2c0] sm:$0xff]
        %v650 = vld [vmem:[#allocation5 + $0x2c8] sm:$0xff]
        %v651 = vld [vmem:[#allocation5 + $0x2d0] sm:$0xff]
        %v652 = vld [vmem:[#allocation5 + $0x2d8] sm:$0xff]
        %v653 = vld [vmem:[#allocation5 + $0x2e0] sm:$0xff]
        %v654 = vld [vmem:[#allocation5 + $0x2e8] sm:$0xff]
        %v655 = vld [vmem:[#allocation5 + $0x2f0] sm:$0xff]
        %v656 = vld [vmem:[#allocation5 + $0x2f8] sm:$0xff]
        %657 = vmatprep.subr.mxu0 0.0
        %658 = vmatpush1.msra.mxu0 %v641
        %659 = vmatprep.subr.mxu0 0.0
        %660 = vmatpush1.msra.mxu0 %v642
        %661 = vmatprep.subr.mxu0 0.0
        %662 = vmatpush1.msra.mxu0 %v643
        %663 = vmatprep.subr.mxu0 0.0
        %664 = vmatpush1.msra.mxu0 %v644
        %665 = vmatprep.subr.mxu0 0.0
        %666 = vmatpush1.msra.mxu0 %v645
        %667 = vmatprep.subr.mxu0 0.0
        %668 = vmatpush1.msra.mxu0 %v646
        %669 = vmatprep.subr.mxu0 0.0
        %670 = vmatpush1.msra.mxu0 %v647
        %671 = vmatprep.subr.mxu0 0.0
        %672 = vmatpush1.msra.mxu0 %v648
        %673 = vmatprep.subr.mxu0 0.0
        %674 = vmatpush1.msra.mxu0 %v649
        %675 = vmatprep.subr.mxu0 0.0
        %676 = vmatpush1.msra.mxu0 %v650
        %677 = vmatprep.subr.mxu0 0.0
        %678 = vmatpush1.msra.mxu0 %v651
        %679 = vmatprep.subr.mxu0 0.0
        %680 = vmatpush1.msra.mxu0 %v652
        %681 = vmatprep.subr.mxu0 0.0
        %682 = vmatpush1.msra.mxu0 %v653
        %683 = vmatprep.subr.mxu0 0.0
        %684 = vmatpush1.msra.mxu0 %v654
        %685 = vmatprep.subr.mxu0 0.0
        %686 = vmatpush1.msra.mxu0 %v655
        %687 = vmatprep.subr.mxu0 0.0
        %688 = vmatpush1.msra.mxu0 %v656
        %689 = vmatprep.subr.mxu0 0.0
        %690 = vmatpush1.msra.mxu0 0.0
        %691 = vmatprep.subr.mxu0 0.0
        %692 = vmatpush1.msra.mxu0 0.0
        %693 = vmatprep.subr.mxu0 0.0
        %694 = vmatpush1.msra.mxu0 0.0
        %695 = vmatprep.subr.mxu0 0.0
        %696 = vmatpush1.msra.mxu0 0.0
        %697 = vmatprep.subr.mxu0 0.0
        %698 = vmatpush1.msra.mxu0 0.0
        %699 = vmatprep.subr.mxu0 0.0
        %700 = vmatpush1.msra.mxu0 0.0
        %701 = vmatprep.subr.mxu0 0.0
        %702 = vmatpush1.msra.mxu0 0.0
        %703 = vmatprep.subr.mxu0 0.0
        %704 = vmatpush1.msra.mxu0 0.0
        %705 = vmatprep.subr.mxu0 0.0
        %706 = vmatpush1.msra.mxu0 0.0
        %707 = vmatprep.subr.mxu0 0.0
        %708 = vmatpush1.msra.mxu0 0.0
        %709 = vmatprep.subr.mxu0 0.0
        %710 = vmatpush1.msra.mxu0 0.0
        %711 = vmatprep.subr.mxu0 0.0
        %712 = vmatpush1.msra.mxu0 0.0
        %713 = vmatprep.subr.mxu0 0.0
        %714 = vmatpush1.msra.mxu0 0.0
        %715 = vmatprep.subr.mxu0 0.0
        %716 = vmatpush1.msra.mxu0 0.0
        %717 = vmatprep.subr.mxu0 0.0
        %718 = vmatpush1.msra.mxu0 0.0
        %719 = vmatprep.subr.mxu0 0.0
        %720 = vmatpush1.msra.mxu0 0.0
        %721 = vmatprep.mubr.f32.mxu0 0.0
        %722 = vmatmul.mubr.f32.gmra.mrb[0].mxu0 %v640
        %v723 = vpop.f32.mrb[0].mxu0
        %v724 = vadd.f32 0.0, %v723
        %v725 = vpop.f32.mrb[0].mxu0
        %726 = vdwg.mxu0
        %v727 = vadd.f32 %v639, %v724
        %v728 = vmul.f32 %v203, %v204
        %v729 = vld [vmem:[#allocation5 + $0x300] sm:$0xff]
        %v730 = vld [vmem:[#allocation5 + $0x308] sm:$0xff]
        %v731 = vld [vmem:[#allocation5 + $0x310] sm:$0xff]
        %v732 = vld [vmem:[#allocation5 + $0x318] sm:$0xff]
        %v733 = vld [vmem:[#allocation5 + $0x320] sm:$0xff]
        %v734 = vld [vmem:[#allocation5 + $0x328] sm:$0xff]
        %v735 = vld [vmem:[#allocation5 + $0x330] sm:$0xff]
        %v736 = vld [vmem:[#allocation5 + $0x338] sm:$0xff]
        %v737 = vld [vmem:[#allocation5 + $0x340] sm:$0xff]
        %v738 = vld [vmem:[#allocation5 + $0x348] sm:$0xff]
        %v739 = vld [vmem:[#allocation5 + $0x350] sm:$0xff]
        %v740 = vld [vmem:[#allocation5 + $0x358] sm:$0xff]
        %v741 = vld [vmem:[#allocation5 + $0x360] sm:$0xff]
        %v742 = vld [vmem:[#allocation5 + $0x368] sm:$0xff]
        %v743 = vld [vmem:[#allocation5 + $0x370] sm:$0xff]
        %v744 = vld [vmem:[#allocation5 + $0x378] sm:$0xff]
        %745 = vmatprep.subr.mxu0 0.0
        %746 = vmatpush1.msra.mxu0 %v729
        %747 = vmatprep.subr.mxu0 0.0
        %748 = vmatpush1.msra.mxu0 %v730
        %749 = vmatprep.subr.mxu0 0.0
        %750 = vmatpush1.msra.mxu0 %v731
        %751 = vmatprep.subr.mxu0 0.0
        %752 = vmatpush1.msra.mxu0 %v732
        %753 = vmatprep.subr.mxu0 0.0
        %754 = vmatpush1.msra.mxu0 %v733
        %755 = vmatprep.subr.mxu0 0.0
        %756 = vmatpush1.msra.mxu0 %v734
        %757 = vmatprep.subr.mxu0 0.0
        %758 = vmatpush1.msra.mxu0 %v735
        %759 = vmatprep.subr.mxu0 0.0
        %760 = vmatpush1.msra.mxu0 %v736
        %761 = vmatprep.subr.mxu0 0.0
        %762 = vmatpush1.msra.mxu0 %v737
        %763 = vmatprep.subr.mxu0 0.0
        %764 = vmatpush1.msra.mxu0 %v738
        %765 = vmatprep.subr.mxu0 0.0
        %766 = vmatpush1.msra.mxu0 %v739
        %767 = vmatprep.subr.mxu0 0.0
        %768 = vmatpush1.msra.mxu0 %v740
        %769 = vmatprep.subr.mxu0 0.0
        %770 = vmatpush1.msra.mxu0 %v741
        %771 = vmatprep.subr.mxu0 0.0
        %772 = vmatpush1.msra.mxu0 %v742
        %773 = vmatprep.subr.mxu0 0.0
        %774 = vmatpush1.msra.mxu0 %v743
        %775 = vmatprep.subr.mxu0 0.0
        %776 = vmatpush1.msra.mxu0 %v744
        %777 = vmatprep.subr.mxu0 0.0
        %778 = vmatpush1.msra.mxu0 0.0
        %779 = vmatprep.subr.mxu0 0.0
        %780 = vmatpush1.msra.mxu0 0.0
        %781 = vmatprep.subr.mxu0 0.0
        %782 = vmatpush1.msra.mxu0 0.0
        %783 = vmatprep.subr.mxu0 0.0
        %784 = vmatpush1.msra.mxu0 0.0
        %785 = vmatprep.subr.mxu0 0.0
        %786 = vmatpush1.msra.mxu0 0.0
        %787 = vmatprep.subr.mxu0 0.0
        %788 = vmatpush1.msra.mxu0 0.0
        %789 = vmatprep.subr.mxu0 0.0
        %790 = vmatpush1.msra.mxu0 0.0
        %791 = vmatprep.subr.mxu0 0.0
        %792 = vmatpush1.msra.mxu0 0.0
        %793 = vmatprep.subr.mxu0 0.0
        %794 = vmatpush1.msra.mxu0 0.0
        %795 = vmatprep.subr.mxu0 0.0
        %796 = vmatpush1.msra.mxu0 0.0
        %797 = vmatprep.subr.mxu0 0.0
        %798 = vmatpush1.msra.mxu0 0.0
        %799 = vmatprep.subr.mxu0 0.0
        %800 = vmatpush1.msra.mxu0 0.0
        %801 = vmatprep.subr.mxu0 0.0
        %802 = vmatpush1.msra.mxu0 0.0
        %803 = vmatprep.subr.mxu0 0.0
        %804 = vmatpush1.msra.mxu0 0.0
        %805 = vmatprep.subr.mxu0 0.0
        %806 = vmatpush1.msra.mxu0 0.0
        %807 = vmatprep.subr.mxu0 0.0
        %808 = vmatpush1.msra.mxu0 0.0
        %809 = vmatprep.mubr.f32.mxu0 0.0
        %810 = vmatmul.mubr.f32.gmra.mrb[0].mxu0 %v728
        %v811 = vpop.f32.mrb[0].mxu0
        %v812 = vadd.f32 0.0, %v811
        %v813 = vpop.f32.mrb[0].mxu0
        %814 = vdwg.mxu0
        %v815 = vadd.f32 %v727, %v812
        %v816 = vmul.f32 %v203, %v205
        %v817 = vld [vmem:[#allocation5 + $0x380] sm:$0xff]
        %v818 = vld [vmem:[#allocation5 + $0x388] sm:$0xff]
        %v819 = vld [vmem:[#allocation5 + $0x390] sm:$0xff]
        %v820 = vld [vmem:[#allocation5 + $0x398] sm:$0xff]
        %v821 = vld [vmem:[#allocation5 + $0x3a0] sm:$0xff]
        %v822 = vld [vmem:[#allocation5 + $0x3a8] sm:$0xff]
        %v823 = vld [vmem:[#allocation5 + $0x3b0] sm:$0xff]
        %v824 = vld [vmem:[#allocation5 + $0x3b8] sm:$0xff]
        %v825 = vld [vmem:[#allocation5 + $0x3c0] sm:$0xff]
        %v826 = vld [vmem:[#allocation5 + $0x3c8] sm:$0xff]
        %v827 = vld [vmem:[#allocation5 + $0x3d0] sm:$0xff]
        %v828 = vld [vmem:[#allocation5 + $0x3d8] sm:$0xff]
        %v829 = vld [vmem:[#allocation5 + $0x3e0] sm:$0xff]
        %v830 = vld [vmem:[#allocation5 + $0x3e8] sm:$0xff]
        %v831 = vld [vmem:[#allocation5 + $0x3f0] sm:$0xff]
        %v832 = vld [vmem:[#allocation5 + $0x3f8] sm:$0xff]
        %833 = vmatprep.subr.mxu0 0.0
        %834 = vmatpush1.msra.mxu0 %v817
        %835 = vmatprep.subr.mxu0 0.0
        %836 = vmatpush1.msra.mxu0 %v818
        %837 = vmatprep.subr.mxu0 0.0
        %838 = vmatpush1.msra.mxu0 %v819
        %839 = vmatprep.subr.mxu0 0.0
        %840 = vmatpush1.msra.mxu0 %v820
        %841 = vmatprep.subr.mxu0 0.0
        %842 = vmatpush1.msra.mxu0 %v821
        %843 = vmatprep.subr.mxu0 0.0
        %844 = vmatpush1.msra.mxu0 %v822
        %845 = vmatprep.subr.mxu0 0.0
        %846 = vmatpush1.msra.mxu0 %v823
        %847 = vmatprep.subr.mxu0 0.0
        %848 = vmatpush1.msra.mxu0 %v824
        %849 = vmatprep.subr.mxu0 0.0
        %850 = vmatpush1.msra.mxu0 %v825
        %851 = vmatprep.subr.mxu0 0.0
        %852 = vmatpush1.msra.mxu0 %v826
        %853 = vmatprep.subr.mxu0 0.0
        %854 = vmatpush1.msra.mxu0 %v827
        %855 = vmatprep.subr.mxu0 0.0
        %856 = vmatpush1.msra.mxu0 %v828
        %857 = vmatprep.subr.mxu0 0.0
        %858 = vmatpush1.msra.mxu0 %v829
        %859 = vmatprep.subr.mxu0 0.0
        %860 = vmatpush1.msra.mxu0 %v830
        %861 = vmatprep.subr.mxu0 0.0
        %862 = vmatpush1.msra.mxu0 %v831
        %863 = vmatprep.subr.mxu0 0.0
        %864 = vmatpush1.msra.mxu0 %v832
        %865 = vmatprep.subr.mxu0 0.0
        %866 = vmatpush1.msra.mxu0 0.0
        %867 = vmatprep.subr.mxu0 0.0
        %868 = vmatpush1.msra.mxu0 0.0
        %869 = vmatprep.subr.mxu0 0.0
        %870 = vmatpush1.msra.mxu0 0.0
        %871 = vmatprep.subr.mxu0 0.0
        %872 = vmatpush1.msra.mxu0 0.0
        %873 = vmatprep.subr.mxu0 0.0
        %874 = vmatpush1.msra.mxu0 0.0
        %875 = vmatprep.subr.mxu0 0.0
        %876 = vmatpush1.msra.mxu0 0.0
        %877 = vmatprep.subr.mxu0 0.0
        %878 = vmatpush1.msra.mxu0 0.0
        %879 = vmatprep.subr.mxu0 0.0
        %880 = vmatpush1.msra.mxu0 0.0
        %881 = vmatprep.subr.mxu0 0.0
        %882 = vmatpush1.msra.mxu0 0.0
        %883 = vmatprep.subr.mxu0 0.0
        %884 = vmatpush1.msra.mxu0 0.0
        %885 = vmatprep.subr.mxu0 0.0
        %886 = vmatpush1.msra.mxu0 0.0
        %887 = vmatprep.subr.mxu0 0.0
        %888 = vmatpush1.msra.mxu0 0.0
        %889 = vmatprep.subr.mxu0 0.0
        %890 = vmatpush1.msra.mxu0 0.0
        %891 = vmatprep.subr.mxu0 0.0
        %892 = vmatpush1.msra.mxu0 0.0
        %893 = vmatprep.subr.mxu0 0.0
        %894 = vmatpush1.msra.mxu0 0.0
        %895 = vmatprep.subr.mxu0 0.0
        %896 = vmatpush1.msra.mxu0 0.0
        %897 = vmatprep.mubr.f32.mxu0 0.0
        %898 = vmatmul.mubr.f32.gmra.mrb[0].mxu0 %v816
        %v899 = vpop.f32.mrb[0].mxu0
        %v900 = vadd.f32 0.0, %v899
        %v901 = vpop.f32.mrb[0].mxu0
        %902 = vdwg.mxu0
        %v903 = vadd.f32 %v815, %v900
        %v904 = vmul.f32 %v202, %v202
        %v905 = vld [vmem:[#allocation5 + $0x400] sm:$0xff]
        %v906 = vld [vmem:[#allocation5 + $0x408] sm:$0xff]
        %v907 = vld [vmem:[#allocation5 + $0x410] sm:$0xff]
        %v908 = vld [vmem:[#allocation5 + $0x418] sm:$0xff]
        %v909 = vld [vmem:[#allocation5 + $0x420] sm:$0xff]
        %v910 = vld [vmem:[#allocation5 + $0x428] sm:$0xff]
        %v911 = vld [vmem:[#allocation5 + $0x430] sm:$0xff]
        %v912 = vld [vmem:[#allocation5 + $0x438] sm:$0xff]
        %v913 = vld [vmem:[#allocation5 + $0x440] sm:$0xff]
        %v914 = vld [vmem:[#allocation5 + $0x448] sm:$0xff]
        %v915 = vld [vmem:[#allocation5 + $0x450] sm:$0xff]
        %v916 = vld [vmem:[#allocation5 + $0x458] sm:$0xff]
        %v917 = vld [vmem:[#allocation5 + $0x460] sm:$0xff]
        %v918 = vld [vmem:[#allocation5 + $0x468] sm:$0xff]
        %v919 = vld [vmem:[#allocation5 + $0x470] sm:$0xff]
        %v920 = vld [vmem:[#allocation5 + $0x478] sm:$0xff]
        %921 = vmatprep.subr.mxu0 0.0
        %922 = vmatpush1.msra.mxu0 %v905
        %923 = vmatprep.subr.mxu0 0.0
        %924 = vmatpush1.msra.mxu0 %v906
        %925 = vmatprep.subr.mxu0 0.0
        %926 = vmatpush1.msra.mxu0 %v907
        %927 = vmatprep.subr.mxu0 0.0
        %928 = vmatpush1.msra.mxu0 %v908
        %929 = vmatprep.subr.mxu0 0.0
        %930 = vmatpush1.msra.mxu0 %v909
        %931 = vmatprep.subr.mxu0 0.0
        %932 = vmatpush1.msra.mxu0 %v910
        %933 = vmatprep.subr.mxu0 0.0
        %934 = vmatpush1.msra.mxu0 %v911
        %935 = vmatprep.subr.mxu0 0.0
        %936 = vmatpush1.msra.mxu0 %v912
        %937 = vmatprep.subr.mxu0 0.0
        %938 = vmatpush1.msra.mxu0 %v913
        %939 = vmatprep.subr.mxu0 0.0
        %940 = vmatpush1.msra.mxu0 %v914
        %941 = vmatprep.subr.mxu0 0.0
        %942 = vmatpush1.msra.mxu0 %v915
        %943 = vmatprep.subr.mxu0 0.0
        %944 = vmatpush1.msra.mxu0 %v916
        %945 = vmatprep.subr.mxu0 0.0
        %946 = vmatpush1.msra.mxu0 %v917
        %947 = vmatprep.subr.mxu0 0.0
        %948 = vmatpush1.msra.mxu0 %v918
        %949 = vmatprep.subr.mxu0 0.0
        %950 = vmatpush1.msra.mxu0 %v919
        %951 = vmatprep.subr.mxu0 0.0
        %952 = vmatpush1.msra.mxu0 %v920
        %953 = vmatprep.subr.mxu0 0.0
        %954 = vmatpush1.msra.mxu0 0.0
        %955 = vmatprep.subr.mxu0 0.0
        %956 = vmatpush1.msra.mxu0 0.0
        %957 = vmatprep.subr.mxu0 0.0
        %958 = vmatpush1.msra.mxu0 0.0
        %959 = vmatprep.subr.mxu0 0.0
        %960 = vmatpush1.msra.mxu0 0.0
        %961 = vmatprep.subr.mxu0 0.0
        %962 = vmatpush1.msra.mxu0 0.0
        %963 = vmatprep.subr.mxu0 0.0
        %964 = vmatpush1.msra.mxu0 0.0
        %965 = vmatprep.subr.mxu0 0.0
        %966 = vmatpush1.msra.mxu0 0.0
        %967 = vmatprep.subr.mxu0 0.0
        %968 = vmatpush1.msra.mxu0 0.0
        %969 = vmatprep.subr.mxu0 0.0
        %970 = vmatpush1.msra.mxu0 0.0
        %971 = vmatprep.subr.mxu0 0.0
        %972 = vmatpush1.msra.mxu0 0.0
        %973 = vmatprep.subr.mxu0 0.0
        %974 = vmatpush1.msra.mxu0 0.0
        %975 = vmatprep.subr.mxu0 0.0
        %976 = vmatpush1.msra.mxu0 0.0
        %977 = vmatprep.subr.mxu0 0.0
        %978 = vmatpush1.msra.mxu0 0.0
        %979 = vmatprep.subr.mxu0 0.0
        %980 = vmatpush1.msra.mxu0 0.0
        %981 = vmatprep.subr.mxu0 0.0
        %982 = vmatpush1.msra.mxu0 0.0
        %983 = vmatprep.subr.mxu0 0.0
        %984 = vmatpush1.msra.mxu0 0.0
        %985 = vmatprep.mubr.f32.mxu0 0.0
        %986 = vmatmul.mubr.f32.gmra.mrb[0].mxu0 %v904
        %v987 = vpop.f32.mrb[0].mxu0
        %v988 = vadd.f32 0.0, %v987
        %v989 = vpop.f32.mrb[0].mxu0
        %990 = vdwg.mxu0
        %v991 = vadd.f32 %v903, %v988
        %v992 = vmul.f32 %v202, %v203
        %v993 = vld [vmem:[#allocation5 + $0x480] sm:$0xff]
        %v994 = vld [vmem:[#allocation5 + $0x488] sm:$0xff]
        %v995 = vld [vmem:[#allocation5 + $0x490] sm:$0xff]
        %v996 = vld [vmem:[#allocation5 + $0x498] sm:$0xff]
        %v997 = vld [vmem:[#allocation5 + $0x4a0] sm:$0xff]
        %v998 = vld [vmem:[#allocation5 + $0x4a8] sm:$0xff]
        %v999 = vld [vmem:[#allocation5 + $0x4b0] sm:$0xff]
        %v1000 = vld [vmem:[#allocation5 + $0x4b8] sm:$0xff]
        %v1001 = vld [vmem:[#allocation5 + $0x4c0] sm:$0xff]
        %v1002 = vld [vmem:[#allocation5 + $0x4c8] sm:$0xff]
        %v1003 = vld [vmem:[#allocation5 + $0x4d0] sm:$0xff]
        %v1004 = vld [vmem:[#allocation5 + $0x4d8] sm:$0xff]
        %v1005 = vld [vmem:[#allocation5 + $0x4e0] sm:$0xff]
        %v1006 = vld [vmem:[#allocation5 + $0x4e8] sm:$0xff]
        %v1007 = vld [vmem:[#allocation5 + $0x4f0] sm:$0xff]
        %v1008 = vld [vmem:[#allocation5 + $0x4f8] sm:$0xff]
        %1009 = vmatprep.subr.mxu0 0.0
        %1010 = vmatpush1.msra.mxu0 %v993
        %1011 = vmatprep.subr.mxu0 0.0
        %1012 = vmatpush1.msra.mxu0 %v994
        %1013 = vmatprep.subr.mxu0 0.0
        %1014 = vmatpush1.msra.mxu0 %v995
        %1015 = vmatprep.subr.mxu0 0.0
        %1016 = vmatpush1.msra.mxu0 %v996
        %1017 = vmatprep.subr.mxu0 0.0
        %1018 = vmatpush1.msra.mxu0 %v997
        %1019 = vmatprep.subr.mxu0 0.0
        %1020 = vmatpush1.msra.mxu0 %v998
        %1021 = vmatprep.subr.mxu0 0.0
        %1022 = vmatpush1.msra.mxu0 %v999
        %1023 = vmatprep.subr.mxu0 0.0
        %1024 = vmatpush1.msra.mxu0 %v1000
        %1025 = vmatprep.subr.mxu0 0.0
        %1026 = vmatpush1.msra.mxu0 %v1001
        %1027 = vmatprep.subr.mxu0 0.0
        %1028 = vmatpush1.msra.mxu0 %v1002
        %1029 = vmatprep.subr.mxu0 0.0
        %1030 = vmatpush1.msra.mxu0 %v1003
        %1031 = vmatprep.subr.mxu0 0.0
        %1032 = vmatpush1.msra.mxu0 %v1004
        %1033 = vmatprep.subr.mxu0 0.0
        %1034 = vmatpush1.msra.mxu0 %v1005
        %1035 = vmatprep.subr.mxu0 0.0
        %1036 = vmatpush1.msra.mxu0 %v1006
        %1037 = vmatprep.subr.mxu0 0.0
        %1038 = vmatpush1.msra.mxu0 %v1007
        %1039 = vmatprep.subr.mxu0 0.0
        %1040 = vmatpush1.msra.mxu0 %v1008
        %1041 = vmatprep.subr.mxu0 0.0
        %1042 = vmatpush1.msra.mxu0 0.0
        %1043 = vmatprep.subr.mxu0 0.0
        %1044 = vmatpush1.msra.mxu0 0.0
        %1045 = vmatprep.subr.mxu0 0.0
        %1046 = vmatpush1.msra.mxu0 0.0
        %1047 = vmatprep.subr.mxu0 0.0
        %1048 = vmatpush1.msra.mxu0 0.0
        %1049 = vmatprep.subr.mxu0 0.0
        %1050 = vmatpush1.msra.mxu0 0.0
        %1051 = vmatprep.subr.mxu0 0.0
        %1052 = vmatpush1.msra.mxu0 0.0
        %1053 = vmatprep.subr.mxu0 0.0
        %1054 = vmatpush1.msra.mxu0 0.0
        %1055 = vmatprep.subr.mxu0 0.0
        %1056 = vmatpush1.msra.mxu0 0.0
        %1057 = vmatprep.subr.mxu0 0.0
        %1058 = vmatpush1.msra.mxu0 0.0
        %1059 = vmatprep.subr.mxu0 0.0
        %1060 = vmatpush1.msra.mxu0 0.0
        %1061 = vmatprep.subr.mxu0 0.0
        %1062 = vmatpush1.msra.mxu0 0.0
        %1063 = vmatprep.subr.mxu0 0.0
        %1064 = vmatpush1.msra.mxu0 0.0
        %1065 = vmatprep.subr.mxu0 0.0
        %1066 = vmatpush1.msra.mxu0 0.0
        %1067 = vmatprep.subr.mxu0 0.0
        %1068 = vmatpush1.msra.mxu0 0.0
        %1069 = vmatprep.subr.mxu0 0.0
        %1070 = vmatpush1.msra.mxu0 0.0
        %1071 = vmatprep.subr.mxu0 0.0
        %1072 = vmatpush1.msra.mxu0 0.0
        %1073 = vmatprep.mubr.f32.mxu0 0.0
        %1074 = vmatmul.mubr.f32.gmra.mrb[0].mxu0 %v992
        %v1075 = vpop.f32.mrb[0].mxu0
        %v1076 = vadd.f32 0.0, %v1075
        %v1077 = vpop.f32.mrb[0].mxu0
        %1078 = vdwg.mxu0
        %v1079 = vadd.f32 %v991, %v1076
        %v1080 = vmul.f32 %v203, %v203
        %v1081 = vld [vmem:[#allocation5 + $0x500] sm:$0xff]
        %v1082 = vld [vmem:[#allocation5 + $0x508] sm:$0xff]
        %v1083 = vld [vmem:[#allocation5 + $0x510] sm:$0xff]
        %v1084 = vld [vmem:[#allocation5 + $0x518] sm:$0xff]
        %v1085 = vld [vmem:[#allocation5 + $0x520] sm:$0xff]
        %v1086 = vld [vmem:[#allocation5 + $0x528] sm:$0xff]
        %v1087 = vld [vmem:[#allocation5 + $0x530] sm:$0xff]
        %v1088 = vld [vmem:[#allocation5 + $0x538] sm:$0xff]
        %v1089 = vld [vmem:[#allocation5 + $0x540] sm:$0xff]
        %v1090 = vld [vmem:[#allocation5 + $0x548] sm:$0xff]
        %v1091 = vld [vmem:[#allocation5 + $0x550] sm:$0xff]
        %v1092 = vld [vmem:[#allocation5 + $0x558] sm:$0xff]
        %v1093 = vld [vmem:[#allocation5 + $0x560] sm:$0xff]
        %v1094 = vld [vmem:[#allocation5 + $0x568] sm:$0xff]
        %v1095 = vld [vmem:[#allocation5 + $0x570] sm:$0xff]
        %v1096 = vld [vmem:[#allocation5 + $0x578] sm:$0xff]
        %1097 = vmatprep.subr.mxu0 0.0
        %1098 = vmatpush1.msra.mxu0 %v1081
        %1099 = vmatprep.subr.mxu0 0.0
        %1100 = vmatpush1.msra.mxu0 %v1082
        %1101 = vmatprep.subr.mxu0 0.0
        %1102 = vmatpush1.msra.mxu0 %v1083
        %1103 = vmatprep.subr.mxu0 0.0
        %1104 = vmatpush1.msra.mxu0 %v1084
        %1105 = vmatprep.subr.mxu0 0.0
        %1106 = vmatpush1.msra.mxu0 %v1085
        %1107 = vmatprep.subr.mxu0 0.0
        %1108 = vmatpush1.msra.mxu0 %v1086
        %1109 = vmatprep.subr.mxu0 0.0
        %1110 = vmatpush1.msra.mxu0 %v1087
        %1111 = vmatprep.subr.mxu0 0.0
        %1112 = vmatpush1.msra.mxu0 %v1088
        %1113 = vmatprep.subr.mxu0 0.0
        %1114 = vmatpush1.msra.mxu0 %v1089
        %1115 = vmatprep.subr.mxu0 0.0
        %1116 = vmatpush1.msra.mxu0 %v1090
        %1117 = vmatprep.subr.mxu0 0.0
        %1118 = vmatpush1.msra.mxu0 %v1091
        %1119 = vmatprep.subr.mxu0 0.0
        %1120 = vmatpush1.msra.mxu0 %v1092
        %1121 = vmatprep.subr.mxu0 0.0
        %1122 = vmatpush1.msra.mxu0 %v1093
        %1123 = vmatprep.subr.mxu0 0.0
        %1124 = vmatpush1.msra.mxu0 %v1094
        %1125 = vmatprep.subr.mxu0 0.0
        %1126 = vmatpush1.msra.mxu0 %v1095
        %1127 = vmatprep.subr.mxu0 0.0
        %1128 = vmatpush1.msra.mxu0 %v1096
        %1129 = vmatprep.subr.mxu0 0.0
        %1130 = vmatpush1.msra.mxu0 0.0
        %1131 = vmatprep.subr.mxu0 0.0
        %1132 = vmatpush1.msra.mxu0 0.0
        %1133 = vmatprep.subr.mxu0 0.0
        %1134 = vmatpush1.msra.mxu0 0.0
        %1135 = vmatprep.subr.mxu0 0.0
        %1136 = vmatpush1.msra.mxu0 0.0
        %1137 = vmatprep.subr.mxu0 0.0
        %1138 = vmatpush1.msra.mxu0 0.0
        %1139 = vmatprep.subr.mxu0 0.0
        %1140 = vmatpush1.msra.mxu0 0.0
        %1141 = vmatprep.subr.mxu0 0.0
        %1142 = vmatpush1.msra.mxu0 0.0
        %1143 = vmatprep.subr.mxu0 0.0
        %1144 = vmatpush1.msra.mxu0 0.0
        %1145 = vmatprep.subr.mxu0 0.0
        %1146 = vmatpush1.msra.mxu0 0.0
        %1147 = vmatprep.subr.mxu0 0.0
        %1148 = vmatpush1.msra.mxu0 0.0
        %1149 = vmatprep.subr.mxu0 0.0
        %1150 = vmatpush1.msra.mxu0 0.0
        %1151 = vmatprep.subr.mxu0 0.0
        %1152 = vmatpush1.msra.mxu0 0.0
        %1153 = vmatprep.subr.mxu0 0.0
        %1154 = vmatpush1.msra.mxu0 0.0
        %1155 = vmatprep.subr.mxu0 0.0
        %1156 = vmatpush1.msra.mxu0 0.0
        %1157 = vmatprep.subr.mxu0 0.0
        %1158 = vmatpush1.msra.mxu0 0.0
        %1159 = vmatprep.subr.mxu0 0.0
        %1160 = vmatpush1.msra.mxu0 0.0
        %1161 = vmatprep.mubr.f32.mxu0 0.0
        %1162 = vmatmul.mubr.f32.gmra.mrb[0].mxu0 %v1080
        %v1163 = vpop.f32.mrb[0].mxu0
        %v1164 = vadd.f32 0.0, %v1163
        %v1165 = vpop.f32.mrb[0].mxu0
        %1166 = vdwg.mxu0
        %v1167 = vadd.f32 %v1079, %v1164
        %v1168 = vmul.f32 %v204, %v204
        %v1169 = vld [vmem:[#allocation5 + $0x580] sm:$0xff]
        %v1170 = vld [vmem:[#allocation5 + $0x588] sm:$0xff]
        %v1171 = vld [vmem:[#allocation5 + $0x590] sm:$0xff]
        %v1172 = vld [vmem:[#allocation5 + $0x598] sm:$0xff]
        %v1173 = vld [vmem:[#allocation5 + $0x5a0] sm:$0xff]
        %v1174 = vld [vmem:[#allocation5 + $0x5a8] sm:$0xff]
        %v1175 = vld [vmem:[#allocation5 + $0x5b0] sm:$0xff]
        %v1176 = vld [vmem:[#allocation5 + $0x5b8] sm:$0xff]
        %v1177 = vld [vmem:[#allocation5 + $0x5c0] sm:$0xff]
        %v1178 = vld [vmem:[#allocation5 + $0x5c8] sm:$0xff]
        %v1179 = vld [vmem:[#allocation5 + $0x5d0] sm:$0xff]
        %v1180 = vld [vmem:[#allocation5 + $0x5d8] sm:$0xff]
        %v1181 = vld [vmem:[#allocation5 + $0x5e0] sm:$0xff]
        %v1182 = vld [vmem:[#allocation5 + $0x5e8] sm:$0xff]
        %v1183 = vld [vmem:[#allocation5 + $0x5f0] sm:$0xff]
        %v1184 = vld [vmem:[#allocation5 + $0x5f8] sm:$0xff]
        %1185 = vmatprep.subr.mxu0 0.0
        %1186 = vmatpush1.msra.mxu0 %v1169
        %1187 = vmatprep.subr.mxu0 0.0
        %1188 = vmatpush1.msra.mxu0 %v1170
        %1189 = vmatprep.subr.mxu0 0.0
        %1190 = vmatpush1.msra.mxu0 %v1171
        %1191 = vmatprep.subr.mxu0 0.0
        %1192 = vmatpush1.msra.mxu0 %v1172
        %1193 = vmatprep.subr.mxu0 0.0
        %1194 = vmatpush1.msra.mxu0 %v1173
        %1195 = vmatprep.subr.mxu0 0.0
        %1196 = vmatpush1.msra.mxu0 %v1174
        %1197 = vmatprep.subr.mxu0 0.0
        %1198 = vmatpush1.msra.mxu0 %v1175
        %1199 = vmatprep.subr.mxu0 0.0
        %1200 = vmatpush1.msra.mxu0 %v1176
        %1201 = vmatprep.subr.mxu0 0.0
        %1202 = vmatpush1.msra.mxu0 %v1177
        %1203 = vmatprep.subr.mxu0 0.0
        %1204 = vmatpush1.msra.mxu0 %v1178
        %1205 = vmatprep.subr.mxu0 0.0
        %1206 = vmatpush1.msra.mxu0 %v1179
        %1207 = vmatprep.subr.mxu0 0.0
        %1208 = vmatpush1.msra.mxu0 %v1180
        %1209 = vmatprep.subr.mxu0 0.0
        %1210 = vmatpush1.msra.mxu0 %v1181
        %1211 = vmatprep.subr.mxu0 0.0
        %1212 = vmatpush1.msra.mxu0 %v1182
        %1213 = vmatprep.subr.mxu0 0.0
        %1214 = vmatpush1.msra.mxu0 %v1183
        %1215 = vmatprep.subr.mxu0 0.0
        %1216 = vmatpush1.msra.mxu0 %v1184
        %1217 = vmatprep.subr.mxu0 0.0
        %1218 = vmatpush1.msra.mxu0 0.0
        %1219 = vmatprep.subr.mxu0 0.0
        %1220 = vmatpush1.msra.mxu0 0.0
        %1221 = vmatprep.subr.mxu0 0.0
        %1222 = vmatpush1.msra.mxu0 0.0
        %1223 = vmatprep.subr.mxu0 0.0
        %1224 = vmatpush1.msra.mxu0 0.0
        %1225 = vmatprep.subr.mxu0 0.0
        %1226 = vmatpush1.msra.mxu0 0.0
        %1227 = vmatprep.subr.mxu0 0.0
        %1228 = vmatpush1.msra.mxu0 0.0
        %1229 = vmatprep.subr.mxu0 0.0
        %1230 = vmatpush1.msra.mxu0 0.0
        %1231 = vmatprep.subr.mxu0 0.0
        %1232 = vmatpush1.msra.mxu0 0.0
        %1233 = vmatprep.subr.mxu0 0.0
        %1234 = vmatpush1.msra.mxu0 0.0
        %1235 = vmatprep.subr.mxu0 0.0
        %1236 = vmatpush1.msra.mxu0 0.0
        %1237 = vmatprep.subr.mxu0 0.0
        %1238 = vmatpush1.msra.mxu0 0.0
        %1239 = vmatprep.subr.mxu0 0.0
        %1240 = vmatpush1.msra.mxu0 0.0
        %1241 = vmatprep.subr.mxu0 0.0
        %1242 = vmatpush1.msra.mxu0 0.0
        %1243 = vmatprep.subr.mxu0 0.0
        %1244 = vmatpush1.msra.mxu0 0.0
        %1245 = vmatprep.subr.mxu0 0.0
        %1246 = vmatpush1.msra.mxu0 0.0
        %1247 = vmatprep.subr.mxu0 0.0
        %1248 = vmatpush1.msra.mxu0 0.0
        %1249 = vmatprep.mubr.f32.mxu0 0.0
        %1250 = vmatmul.mubr.f32.gmra.mrb[0].mxu0 %v1168
        %v1251 = vpop.f32.mrb[0].mxu0
        %v1252 = vadd.f32 0.0, %v1251
        %v1253 = vpop.f32.mrb[0].mxu0
        %1254 = vdwg.mxu0
        %v1255 = vadd.f32 %v1167, %v1252
        %v1256 = vmul.f32 %v204, %v205
        %v1257 = vld [vmem:[#allocation5 + $0x600] sm:$0xff]
        %v1258 = vld [vmem:[#allocation5 + $0x608] sm:$0xff]
        %v1259 = vld [vmem:[#allocation5 + $0x610] sm:$0xff]
        %v1260 = vld [vmem:[#allocation5 + $0x618] sm:$0xff]
        %v1261 = vld [vmem:[#allocation5 + $0x620] sm:$0xff]
        %v1262 = vld [vmem:[#allocation5 + $0x628] sm:$0xff]
        %v1263 = vld [vmem:[#allocation5 + $0x630] sm:$0xff]
        %v1264 = vld [vmem:[#allocation5 + $0x638] sm:$0xff]
        %v1265 = vld [vmem:[#allocation5 + $0x640] sm:$0xff]
        %v1266 = vld [vmem:[#allocation5 + $0x648] sm:$0xff]
        %v1267 = vld [vmem:[#allocation5 + $0x650] sm:$0xff]
        %v1268 = vld [vmem:[#allocation5 + $0x658] sm:$0xff]
        %v1269 = vld [vmem:[#allocation5 + $0x660] sm:$0xff]
        %v1270 = vld [vmem:[#allocation5 + $0x668] sm:$0xff]
        %v1271 = vld [vmem:[#allocation5 + $0x670] sm:$0xff]
        %v1272 = vld [vmem:[#allocation5 + $0x678] sm:$0xff]
        %1273 = vmatprep.subr.mxu0 0.0
        %1274 = vmatpush1.msra.mxu0 %v1257
        %1275 = vmatprep.subr.mxu0 0.0
        %1276 = vmatpush1.msra.mxu0 %v1258
        %1277 = vmatprep.subr.mxu0 0.0
        %1278 = vmatpush1.msra.mxu0 %v1259
        %1279 = vmatprep.subr.mxu0 0.0
        %1280 = vmatpush1.msra.mxu0 %v1260
        %1281 = vmatprep.subr.mxu0 0.0
        %1282 = vmatpush1.msra.mxu0 %v1261
        %1283 = vmatprep.subr.mxu0 0.0
        %1284 = vmatpush1.msra.mxu0 %v1262
        %1285 = vmatprep.subr.mxu0 0.0
        %1286 = vmatpush1.msra.mxu0 %v1263
        %1287 = vmatprep.subr.mxu0 0.0
        %1288 = vmatpush1.msra.mxu0 %v1264
        %1289 = vmatprep.subr.mxu0 0.0
        %1290 = vmatpush1.msra.mxu0 %v1265
        %1291 = vmatprep.subr.mxu0 0.0
        %1292 = vmatpush1.msra.mxu0 %v1266
        %1293 = vmatprep.subr.mxu0 0.0
        %1294 = vmatpush1.msra.mxu0 %v1267
        %1295 = vmatprep.subr.mxu0 0.0
        %1296 = vmatpush1.msra.mxu0 %v1268
        %1297 = vmatprep.subr.mxu0 0.0
        %1298 = vmatpush1.msra.mxu0 %v1269
        %1299 = vmatprep.subr.mxu0 0.0
        %1300 = vmatpush1.msra.mxu0 %v1270
        %1301 = vmatprep.subr.mxu0 0.0
        %1302 = vmatpush1.msra.mxu0 %v1271
        %1303 = vmatprep.subr.mxu0 0.0
        %1304 = vmatpush1.msra.mxu0 %v1272
        %1305 = vmatprep.subr.mxu0 0.0
        %1306 = vmatpush1.msra.mxu0 0.0
        %1307 = vmatprep.subr.mxu0 0.0
        %1308 = vmatpush1.msra.mxu0 0.0
        %1309 = vmatprep.subr.mxu0 0.0
        %1310 = vmatpush1.msra.mxu0 0.0
        %1311 = vmatprep.subr.mxu0 0.0
        %1312 = vmatpush1.msra.mxu0 0.0
        %1313 = vmatprep.subr.mxu0 0.0
        %1314 = vmatpush1.msra.mxu0 0.0
        %1315 = vmatprep.subr.mxu0 0.0
        %1316 = vmatpush1.msra.mxu0 0.0
        %1317 = vmatprep.subr.mxu0 0.0
        %1318 = vmatpush1.msra.mxu0 0.0
        %1319 = vmatprep.subr.mxu0 0.0
        %1320 = vmatpush1.msra.mxu0 0.0
        %1321 = vmatprep.subr.mxu0 0.0
        %1322 = vmatpush1.msra.mxu0 0.0
        %1323 = vmatprep.subr.mxu0 0.0
        %1324 = vmatpush1.msra.mxu0 0.0
        %1325 = vmatprep.subr.mxu0 0.0
        %1326 = vmatpush1.msra.mxu0 0.0
        %1327 = vmatprep.subr.mxu0 0.0
        %1328 = vmatpush1.msra.mxu0 0.0
        %1329 = vmatprep.subr.mxu0 0.0
        %1330 = vmatpush1.msra.mxu0 0.0
        %1331 = vmatprep.subr.mxu0 0.0
        %1332 = vmatpush1.msra.mxu0 0.0
        %1333 = vmatprep.subr.mxu0 0.0
        %1334 = vmatpush1.msra.mxu0 0.0
        %1335 = vmatprep.subr.mxu0 0.0
        %1336 = vmatpush1.msra.mxu0 0.0
        %1337 = vmatprep.mubr.f32.mxu0 0.0
        %1338 = vmatmul.mubr.f32.gmra.mrb[0].mxu0 %v1256
        %v1339 = vpop.f32.mrb[0].mxu0
        %v1340 = vadd.f32 0.0, %v1339
        %v1341 = vpop.f32.mrb[0].mxu0
        %1342 = vdwg.mxu0
        %v1343 = vadd.f32 %v1255, %v1340
        %v1344 = vmul.f32 %v205, %v205
        %v1345 = vld [vmem:[#allocation5 + $0x680] sm:$0xff]
        %v1346 = vld [vmem:[#allocation5 + $0x688] sm:$0xff]
        %v1347 = vld [vmem:[#allocation5 + $0x690] sm:$0xff]
        %v1348 = vld [vmem:[#allocation5 + $0x698] sm:$0xff]
        %v1349 = vld [vmem:[#allocation5 + $0x6a0] sm:$0xff]
        %v1350 = vld [vmem:[#allocation5 + $0x6a8] sm:$0xff]
        %v1351 = vld [vmem:[#allocation5 + $0x6b0] sm:$0xff]
        %v1352 = vld [vmem:[#allocation5 + $0x6b8] sm:$0xff]
        %v1353 = vld [vmem:[#allocation5 + $0x6c0] sm:$0xff]
        %v1354 = vld [vmem:[#allocation5 + $0x6c8] sm:$0xff]
        %v1355 = vld [vmem:[#allocation5 + $0x6d0] sm:$0xff]
        %v1356 = vld [vmem:[#allocation5 + $0x6d8] sm:$0xff]
        %v1357 = vld [vmem:[#allocation5 + $0x6e0] sm:$0xff]
        %v1358 = vld [vmem:[#allocation5 + $0x6e8] sm:$0xff]
        %v1359 = vld [vmem:[#allocation5 + $0x6f0] sm:$0xff]
        %v1360 = vld [vmem:[#allocation5 + $0x6f8] sm:$0xff]
        %1361 = vmatprep.subr.mxu0 0.0
        %1362 = vmatpush1.msra.mxu0 %v1345
        %1363 = vmatprep.subr.mxu0 0.0
        %1364 = vmatpush1.msra.mxu0 %v1346
        %1365 = vmatprep.subr.mxu0 0.0
        %1366 = vmatpush1.msra.mxu0 %v1347
        %1367 = vmatprep.subr.mxu0 0.0
        %1368 = vmatpush1.msra.mxu0 %v1348
        %1369 = vmatprep.subr.mxu0 0.0
        %1370 = vmatpush1.msra.mxu0 %v1349
        %1371 = vmatprep.subr.mxu0 0.0
        %1372 = vmatpush1.msra.mxu0 %v1350
        %1373 = vmatprep.subr.mxu0 0.0
        %1374 = vmatpush1.msra.mxu0 %v1351
        %1375 = vmatprep.subr.mxu0 0.0
        %1376 = vmatpush1.msra.mxu0 %v1352
        %1377 = vmatprep.subr.mxu0 0.0
        %1378 = vmatpush1.msra.mxu0 %v1353
        %1379 = vmatprep.subr.mxu0 0.0
        %1380 = vmatpush1.msra.mxu0 %v1354
        %1381 = vmatprep.subr.mxu0 0.0
        %1382 = vmatpush1.msra.mxu0 %v1355
        %1383 = vmatprep.subr.mxu0 0.0
        %1384 = vmatpush1.msra.mxu0 %v1356
        %1385 = vmatprep.subr.mxu0 0.0
        %1386 = vmatpush1.msra.mxu0 %v1357
        %1387 = vmatprep.subr.mxu0 0.0
        %1388 = vmatpush1.msra.mxu0 %v1358
        %1389 = vmatprep.subr.mxu0 0.0
        %1390 = vmatpush1.msra.mxu0 %v1359
        %1391 = vmatprep.subr.mxu0 0.0
        %1392 = vmatpush1.msra.mxu0 %v1360
        %1393 = vmatprep.subr.mxu0 0.0
        %1394 = vmatpush1.msra.mxu0 0.0
        %1395 = vmatprep.subr.mxu0 0.0
        %1396 = vmatpush1.msra.mxu0 0.0
        %1397 = vmatprep.subr.mxu0 0.0
        %1398 = vmatpush1.msra.mxu0 0.0
        %1399 = vmatprep.subr.mxu0 0.0
        %1400 = vmatpush1.msra.mxu0 0.0
        %1401 = vmatprep.subr.mxu0 0.0
        %1402 = vmatpush1.msra.mxu0 0.0
        %1403 = vmatprep.subr.mxu0 0.0
        %1404 = vmatpush1.msra.mxu0 0.0
        %1405 = vmatprep.subr.mxu0 0.0
        %1406 = vmatpush1.msra.mxu0 0.0
        %1407 = vmatprep.subr.mxu0 0.0
        %1408 = vmatpush1.msra.mxu0 0.0
        %1409 = vmatprep.subr.mxu0 0.0
        %1410 = vmatpush1.msra.mxu0 0.0
        %1411 = vmatprep.subr.mxu0 0.0
        %1412 = vmatpush1.msra.mxu0 0.0
        %1413 = vmatprep.subr.mxu0 0.0
        %1414 = vmatpush1.msra.mxu0 0.0
        %1415 = vmatprep.subr.mxu0 0.0
        %1416 = vmatpush1.msra.mxu0 0.0
        %1417 = vmatprep.subr.mxu0 0.0
        %1418 = vmatpush1.msra.mxu0 0.0
        %1419 = vmatprep.subr.mxu0 0.0
        %1420 = vmatpush1.msra.mxu0 0.0
        %1421 = vmatprep.subr.mxu0 0.0
        %1422 = vmatpush1.msra.mxu0 0.0
        %1423 = vmatprep.subr.mxu0 0.0
        %1424 = vmatpush1.msra.mxu0 0.0
        %1425 = vmatprep.mubr.f32.mxu0 0.0
        %1426 = vmatmul.mubr.f32.gmra.mrb[0].mxu0 %v1344
        %v1427 = vpop.f32.mrb[0].mxu0
        %v1428 = vadd.f32 0.0, %v1427
        %v1429 = vpop.f32.mrb[0].mxu0
        %1430 = vdwg.mxu0
        %v1431 = vadd.f32 %v1343, %v1428
        %v1432 = vld [vmem:[%s2] sm:$0x1]
        %v1434 = vlaneseq
        %v1435 = vshrl.u32 %v1434, 7
        %v1436 = vsub.s32 0, %v1435
        %v1437 = vrot.slane %v1432, %v1436
        %v1439 = vadd.f32 %v1431, %v1437
        %v1440 = vmax.f32 %v1439, 1e-16
        %1442 = vrot.lane.b32.xlu0 %v1440, 112
        %v1443 = vpop.permute.xlu0 %1442
        %v1445 = vmul.f32 %v1440, %v1443
        %v1446 = vrsqrt.pop %v1445
        %1448 = vrot.lane.b32.xlu0 %v1446, 112
        %v1449 = vpop.permute.xlu0 %1448
        %v1451 = vmul.f32 %v1439, %v1449
        %vm1452 = vcmask 130048
        %1453 = vst.msk [vmem:[%s201] sm:$0xff] %vm1452, %v1451
        %s1454 = sand.u32 %s97, 1
        %s1455 = scalar_lea.sflag [#allocation4], %s1454
        %s1456 = sand.u32 %s97, 1
        %s1457 = smul.addr %s1456, 8
        %s1458 = scalar_lea.vmem [#allocation7], %s1457
        // Predicated region
        $region41: #{tpu_custom_call.1} parent=31 // pred_check
          %p1459 = pneg %p107
        $region42: #{tpu_custom_call.1} parent=31 // pred_check_branch
          %1461 = sbr.rel (%p1459) target = $region44
        $region43: #{tpu_custom_call.1} parent=31 // pred_region
          %s1463 = ssub.s32 128, 128
          %1464 = vsyncadd %s1455, %s1463
          %s1465 = smul.addr %s21, 128
          %s1466 = scalar_lea.hbm %s3, %s1465
          %s1468 = sshll.u32 %s1458, 4
          %s1469 = int_to_ptr.vmem [resolvable:$true] %s1468
          %1471 = dma.vmem_to_hbm [thread:$0]  %s1469, 128, %s1466, %s1455
        $region44: #{tpu_custom_call.1} parent=31 // pred_fallthru
          _
      $region32: #{tpu_custom_call.1} parent=5 // pred_fallthru
        _
      %p1472 = scmp.le.s32.totalorder 2, %s16
      // Predicated region
      $region45: #{tpu_custom_call.1} parent=5 // pred_check
        %p1473 = pneg %p1472
      $region46: #{tpu_custom_call.1} parent=5 // pred_check_branch
        %1475 = sbr.rel (%p1473) target = $region48
      $region47: #{tpu_custom_call.1} parent=5 // pred_region
        %s1476 = ssub.s32 %s16, 2
        // Predicated region
        $region49: #{tpu_custom_call.1} parent=47 // pred_check
          %p1477 = pneg %p113
        $region50: #{tpu_custom_call.1} parent=47 // pred_check_branch
          %1479 = sbr.rel (%p1477) target = $region52
        $region51: #{tpu_custom_call.1} parent=47 // pred_region
          %s1480 = sand.u32 %s98, 1
          %s1481 = scalar_lea.sflag [#allocation4], %s1480
          %s1482 = sand.u32 %s98, 1
          %s1483 = smul.addr %s1482, 8
          %s1484 = scalar_lea.vmem [#allocation7], %s1483
          %1485 = dma.done %s1481, 128
        $region52: #{tpu_custom_call.1} parent=47 // pred_fallthru
          _
      $region48: #{tpu_custom_call.1} parent=5 // pred_fallthru
        _
    $region6: #{tpu_custom_call.1} parent=1 // loop_footer
      %s20 = sadd.s32 1, %s16
    $region7: #{tpu_custom_call.1} parent=1 // loop_footer_branch
      %15 = sbr.rel target = $region3
    $region8: #{tpu_custom_call.1} parent=1 // loop_exit
      _
    %1486 = vsyncpa [#allocation3], 1
    %s1487 = scalar_lea.sflag [#allocation3], 1
    %1488 = vsyncpa %s1487, 1
    %1489 = vsyncpa [#allocation6], 1
    %1490 = vsyncpa [#allocation4], 1
    %s1491 = scalar_lea.sflag [#allocation4], 1
    %1492 = vsyncpa %s1491, 1

</llo_original>
